<compile_context>
chip_gen: v7x
topology: tpu7x:2x2x1
jax: 0.10.0
libtpu: 0.0.40
codegen_flags: <defaults>
</compile_context>

<pallas_src>
import functools

import jax
import jax.numpy as jnp
from jax.experimental import pallas as pl
from jax.experimental.pallas import tpu as pltpu


# ---------------------------------------------------------------------------
# helpers
# ---------------------------------------------------------------------------
def _round_up(x, m):
    return (x + m - 1) // m * m


def _tile_vmem_bytes(th, W, cin, c1p, c2p, c3p):
    """Rough per-tile VMEM need (double-buffered in/out, weights, scratch)."""
    pix = th * W
    halo = (th + 2) * W
    weights = 2 * 2 * (cin * c1p + 9 * c1p * c2p + c2p * c3p)   # bf16, x2 buffers
    inp = 2 * (pix + 2 * W) * cin * 2                            # bf16, x2 buffers
    out = 2 * pix * c3p * 2                                      # bf16, x2 buffers
    cat = halo * 3 * c1p * 2                                     # bf16 dx-merged scratch
    acc = pix * c2p * 4                                          # f32 accumulator
    return weights + inp + out + cat + acc


def _pick_row_tile(H, W, cin, c1p, c2p, c3p, *,
                   budget_bytes=24 << 20, max_pixels=8192):
    """Largest row tile under the VMEM byte budget; pads H if no divisor fits."""
    def fits(th):
        return (th * W <= max_pixels and
                _tile_vmem_bytes(th, W, cin, c1p, c2p, c3p) <= budget_bytes)

    best_div = 0
    for th in range(1, H + 1):
        if H % th == 0 and fits(th):
            best_div = th
    if best_div:
        return best_div, H                      # exact tiling, no padding
    best = 1
    for th in range(1, H + 1):
        if fits(th):
            best = th
    return best, _round_up(H, best)             # padded H -> masked tail path


# ---------------------------------------------------------------------------
# Fused ConvBlock kernel
#   xt_ref : (1,  W, Cin)      bf16 halo row above the tile (clamped row)
#   xm_ref : (TH, W, Cin)      bf16 main rows
#   xb_ref : (1,  W, Cin)      bf16 halo row below the tile (clamped row)
#   w1_ref : (Cin, C1p)        bf16, BN scale folded, Cout zero-padded to 128
#   b1_ref : (1, C1p)          f32 folded bias
#   w2_ref : (3, 3*C1p, C2p)   bf16, K stacked over (dx, c1) per dy
#   b2_ref : (1, C2p)          f32
#   w3_ref : (C2p, C3p)        bf16
#   b3_ref : (1, C3p)          f32
#   o_ref  : (TH, W, C3p)      bf16 output tile (lane-dense)
#   cat_ref: (TH+2, W, 3*C1p)  bf16 scratch: [t1[w-1] | t1[w] | t1[w+1]]
#   acc_ref: (TH*W, C2p)       f32 layer-2 accumulator scratch
# ---------------------------------------------------------------------------
def _conv_block_kernel(xt_ref, xm_ref, xb_ref, w1_ref, b1_ref, w2_ref, b2_ref,
                       w3_ref, b3_ref, o_ref, cat_ref, acc_ref, *,
                       h_valid, mask_rows):
    TH, W, Cin = xm_ref.shape
    TH2 = TH + 2
    C1p = w1_ref.shape[1]
    C2p = w2_ref.shape[2]
    C3p = w3_ref.shape[1]
    i = pl.program_id(1)

    # ---- layer 1: 1x1 conv (+ folded BN) + ReLU over the (TH+2)-row working set
    xw = jnp.concatenate([xt_ref[...], xm_ref[...], xb_ref[...]], axis=0)
    t1 = jnp.maximum(
        jnp.dot(xw.reshape(TH2 * W, Cin), w1_ref[...],
                preferred_element_type=jnp.float32) + b1_ref[...],
        0.0).reshape(TH2, W, C1p)

    if mask_rows:
        # Padded-H path: zero every layer-1 row outside the real image so the
        # 3x3 conv sees proper zero padding of the *layer-1 output*.
        g = jax.lax.broadcasted_iota(jnp.int32, (TH2, 1, 1), 0) + i * TH - 1
        t1 = jnp.where((g >= 0) & (g < h_valid), t1, 0.0)

    # ---- in-VMEM im2col along dx only: cat[r,w] = [t1[r,w-1] | t1[r,w] | t1[r,w+1]]
    zcol = jnp.zeros((TH2, 1, C1p), jnp.float32)
    left = jnp.concatenate([zcol, t1[:, :W - 1, :]], axis=1)   # col w-1, 0 at w=0
    right = jnp.concatenate([t1[:, 1:, :], zcol], axis=1)      # col w+1, 0 at w=W-1
    cat_ref[...] = jnp.concatenate([left, t1, right], axis=-1).astype(jnp.bfloat16)

    if not mask_rows:
        # Divisible-H path: only the two halo rows can ever be out of range.
        zrow = jnp.zeros((1, W, 3 * C1p), jnp.bfloat16)

        @pl.when(i == 0)
        def _():
            cat_ref[0:1, :, :] = zrow

        @pl.when(i == pl.num_programs(1) - 1)
        def _():
            cat_ref[TH + 1:TH + 2, :, :] = zrow

    # ---- layer 2: 3x3 conv (+ folded BN) + ReLU as 3 matmuls of K = 3*C1p ----
    for dy in range(3):
        tap = cat_ref[dy:dy + TH, :, :].reshape(TH * W, 3 * C1p)   # contiguous view
        contrib = jnp.dot(tap, w2_ref[dy], preferred_element_type=jnp.float32)
        if dy == 0:
            acc_ref[...] = contrib
        else:
            acc_ref[...] += contrib
    t2 = jnp.maximum(acc_ref[...] + b2_ref[...], 0.0).astype(jnp.bfloat16)

    # ---- layer 3: 1x1 conv (+ folded BN) + ReLU, lane-dense bf16 store -------
    y3 = jnp.dot(t2, w3_ref[...], preferred_element_type=jnp.float32) + b3_ref[...]
    o_ref[...] = jnp.maximum(y3, 0.0).reshape(TH, W, C3p).astype(o_ref.dtype)


# ---------------------------------------------------------------------------
# Parameter folding: conv + eval-mode BN -> (bf16 weights, f32 bias), output
# channels zero-padded to a multiple of 128, 3x3 taps K-stacked over dx.
# ---------------------------------------------------------------------------
def fold_conv_block_params(all_params, eps=1e-5):
    (w1, b1, g1, be1, m1, v1) = all_params[0]
    (w2, b2, g2, be2, m2, v2) = all_params[1]
    (w3, b3, g3, be3, m3, v3) = all_params[2]
    c1, cin = w1.shape[0], w1.shape[1]
    c2, c3 = w2.shape[0], w3.shape[0]
    c1p, c2p, c3p = (_round_up(c, 128) for c in (c1, c2, c3))

    s1 = g1 / jnp.sqrt(v1 + eps)
    s2 = g2 / jnp.sqrt(v2 + eps)
    s3 = g3 / jnp.sqrt(v3 + eps)
    bb1 = (b1 - m1) * s1 + be1
    bb2 = (b2 - m2) * s2 + be2
    bb3 = (b3 - m3) * s3 + be3

    wm1 = w1[:, :, 0, 0].T * s1[None, :]                  # (cin, c1)
    wm3 = w3[:, :, 0, 0].T * s3[None, :]                  # (c2, c3)
    wk2 = jnp.transpose(w2, (2, 3, 1, 0)) * s2            # (kh, kw, c1, c2)

    w1p = jnp.pad(wm1, ((0, 0), (0, c1p - c1))).astype(jnp.bfloat16)
    w3p = jnp.pad(wm3, ((0, c2p - c2), (0, c3p - c3))).astype(jnp.bfloat16)
    w2p = jnp.pad(wk2, ((0, 0), (0, 0), (0, c1p - c1), (0, c2p - c2)))
    w2p = w2p.reshape(3, 3 * c1p, c2p).astype(jnp.bfloat16)   # K index = dx*C1p + c
    b1p = jnp.pad(bb1, (0, c1p - c1)).reshape(1, c1p).astype(jnp.float32)
    b2p = jnp.pad(bb2, (0, c2p - c2)).reshape(1, c2p).astype(jnp.float32)
    b3p = jnp.pad(bb3, (0, c3p - c3)).reshape(1, c3p).astype(jnp.float32)
    return (w1p, b1p, w2p, b2p, w3p, b3p), (cin, c1p, c2p, c3, c3p)


# ---------------------------------------------------------------------------
# Core: padded-NHWC bf16 in -> lane-padded NHWC bf16 out (chainable between
# blocks with zero layout plumbing). Halo rows come straight from HBM via two
# extra one-row BlockSpecs with clamped index maps (no wrapper-side gather).
# ---------------------------------------------------------------------------
def conv_block_nhwc(x_nhwc, folded, dims, *, row_tile=None):
    (w1p, b1p, w2p, b2p, w3p, b3p) = folded
    (cin, c1p, c2p, _c3, c3p) = dims
    N, H, W, Cin = x_nhwc.shape
    assert Cin == cin

    if row_tile is not None:
        th = max(1, min(int(row_tile), H))
        Hp = _round_up(H, th)
    else:
        th, Hp = _pick_row_tile(H, W, cin, c1p, c2p, c3p)
    n_tiles = Hp // th
    mask_rows = (Hp != H)

    x = x_nhwc
    if Hp != H:
        x = jnp.pad(x, ((0, 0), (0, Hp - H), (0, 0), (0, 0)))

    kernel = functools.partial(_conv_block_kernel, h_valid=H, mask_rows=mask_rows)

    top_map = lambda n, i: (n, jnp.maximum(i * th - 1, 0), 0, 0)
    mid_map = lambda n, i: (n, i, 0, 0)
    bot_map = lambda n, i: (n, jnp.minimum(i * th + th, Hp - 1), 0, 0)

    vmem_need = _tile_vmem_bytes(th, W, cin, c1p, c2p, c3p)
    vmem_limit = int(min(max(32 << 20, 2 * vmem_need), 64 << 20))

    out = pl.pallas_call(
        kernel,
        out_shape=jax.ShapeDtypeStruct((N, Hp, W, c3p), jnp.bfloat16),
        grid_spec=pltpu.PrefetchScalarGridSpec(
            num_scalar_prefetch=0,
            grid=(N, n_tiles),
            in_specs=[
                pl.BlockSpec((None, 1, W, Cin), top_map),    # halo row above
                pl.BlockSpec((None, th, W, Cin), mid_map),   # main rows
                pl.BlockSpec((None, 1, W, Cin), bot_map),    # halo row below
                # weights / biases: constant index maps -> VMEM resident
                pl.BlockSpec((Cin, c1p), lambda n, i: (0, 0)),
                pl.BlockSpec((1, c1p), lambda n, i: (0, 0)),
                pl.BlockSpec((3, 3 * c1p, c2p), lambda n, i: (0, 0, 0)),
                pl.BlockSpec((1, c2p), lambda n, i: (0, 0)),
                pl.BlockSpec((c2p, c3p), lambda n, i: (0, 0)),
                pl.BlockSpec((1, c3p), lambda n, i: (0, 0)),
            ],
            out_specs=pl.BlockSpec((None, th, W, c3p), lambda n, i: (n, i, 0, 0)),
            scratch_shapes=[
                pltpu.VMEM((th + 2, W, 3 * c1p), jnp.bfloat16),   # dx-merged t1
                pltpu.VMEM((th * W, c2p), jnp.float32),           # layer-2 acc
            ],
        ),
        compiler_params=pltpu.CompilerParams(
            dimension_semantics=("parallel", "parallel"),
            vmem_limit_bytes=vmem_limit,
        ),
    )(x, x, x, w1p, b1p, w2p, b2p, w3p, b3p)
    return out   # (N, Hp, W, c3p) bf16, lane-padded channels


# ---------------------------------------------------------------------------
# Module-boundary wrapper (matches the PyTorch NCHW/f32 interface).
# ---------------------------------------------------------------------------
def conv_block_forward(x_nchw, all_params, *, row_tile=None, eps=1e-5):
    N, _Cin, H, W = x_nchw.shape
    folded, dims = fold_conv_block_params(all_params, eps)
    c3 = dims[3]
    # NCHW->NHWC + bf16 only at the boundary; stacked blocks should chain
    # through conv_block_nhwc directly.
    x = jnp.transpose(x_nchw, (0, 2, 3, 1)).astype(jnp.bfloat16)
    y = conv_block_nhwc(x, folded, dims, row_tile=row_tile)
    y = y[:, :H, :, :c3].astype(jnp.float32)          # drop pad rows / channels
    return jnp.transpose(y, (0, 3, 1, 2))


# ---------------------------------------------------------------------------
# Deterministic parameter init (synthetic; shapes follow the PyTorch module)
# ---------------------------------------------------------------------------
def init_conv_layer(key, ch_in, ch_out, ksize):
    k_w, k_b, k_g, k_be, k_m, k_v = jax.random.split(key, 6)
    w = 0.1 * jax.random.normal(k_w, (ch_out, ch_in, ksize, ksize), jnp.float32)
    b = 0.05 * jax.random.normal(k_b, (ch_out,), jnp.float32)
    gamma = 1.0 + 0.1 * jax.random.normal(k_g, (ch_out,), jnp.float32)
    beta = 0.05 * jax.random.normal(k_be, (ch_out,), jnp.float32)
    r_mean = 0.05 * jax.random.normal(k_m, (ch_out,), jnp.float32)
    r_var = jax.random.uniform(k_v, (ch_out,), jnp.float32, 0.5, 1.5)
    return (w, b, gamma, beta, r_mean, r_var)


def init_conv_block(key, ch_in, ch_1, ch_2, ch_3):
    k1, k2, k3 = jax.random.split(key, 3)
    return [
        init_conv_layer(k1, ch_in, ch_1, 1),
        init_conv_layer(k2, ch_1, ch_2, 3),
        init_conv_layer(k3, ch_2, ch_3, 1),
    ]


# ---------------------------------------------------------------------------
# Reference (pure JAX/XLA, f32) implementation for the correctness check
# ---------------------------------------------------------------------------
def _reference_forward(x_nchw, all_params, eps=1e-5):
    x = x_nchw
    for (w, b, gamma, beta, r_mean, r_var), k in zip(all_params, (1, 3, 1)):
        pad = (k - 1) // 2
        y = jax.lax.conv_general_dilated(
            x, w, window_strides=(1, 1), padding=((pad, pad), (pad, pad)),
            dimension_numbers=("NCHW", "OIHW", "NCHW"))
        y = y + b[None, :, None, None]
        y = (y - r_mean[None, :, None, None]) / jnp.sqrt(r_var[None, :, None, None] + eps)
        y = gamma[None, :, None, None] * y + beta[None, :, None, None]
        x = jnp.maximum(y, 0.0)
    return x


if __name__ == "__main__":
    N, ch_in, H, W = 2, 4, 16, 16
    ch_1, ch_2, ch_3 = 8, 8, 16

    key = jax.random.PRNGKey(0)
    k_x, k_p, k_x2 = jax.random.split(key, 3)
    x = jax.random.normal(k_x, (N, ch_in, H, W), jnp.float32)
    params = init_conv_block(k_p, ch_in, ch_1, ch_2, ch_3)

    ref = jax.block_until_ready(_reference_forward(x, params))

    # 1) multi-tile halo path (row_tile=8 -> two halo tiles per image)
    out = jax.block_until_ready(
        jax.jit(functools.partial(conv_block_forward, row_tile=8))(x, params))
    assert out.shape == (N, ch_3, H, W), out.shape
    max_err = float(jnp.max(jnp.abs(out - ref)))
    mean_err = float(jnp.mean(jnp.abs(out - ref)))
    assert max_err < 1e-1, max_err       # bf16 MXU inputs / bf16 output, f32 acc
    assert mean_err < 1.5e-2, mean_err

    # 2) auto-picked tile (single tile per image)
    out2 = jax.block_until_ready(jax.jit(conv_block_forward)(x, params))
    assert float(jnp.max(jnp.abs(out2 - ref))) < 1e-1

    # 3) padded / masked-tail path: H not divisible by the requested row tile
    x3 = jax.random.normal(k_x2, (N, ch_in, 10, W), jnp.float32)
    ref3 = jax.block_until_ready(_reference_forward(x3, params))
    out3 = jax.block_until_ready(
        jax.jit(functools.partial(conv_block_forward, row_tile=4))(x3, params))
    assert out3.shape == (N, ch_3, 10, W), out3.shape
    assert float(jnp.max(jnp.abs(out3 - ref3))) < 1e-1

    print("KERNEL_OK")
</pallas_src>

<mosaic_0001>
module attributes {stable_mosaic.version = 11 : i64} {
  func.func @_conv_block_kernel(%arg0: i32, %arg1: i32, %arg2: memref<1x1x16x4xbf16, #tpu.memory_space<vmem>>, %arg3: memref<1x8x16x4xbf16, #tpu.memory_space<vmem>>, %arg4: memref<1x1x16x4xbf16, #tpu.memory_space<vmem>>, %arg5: memref<4x128xbf16, #tpu.memory_space<vmem>>, %arg6: memref<1x128xf32, #tpu.memory_space<vmem>>, %arg7: memref<3x384x128xbf16, #tpu.memory_space<vmem>>, %arg8: memref<1x128xf32, #tpu.memory_space<vmem>>, %arg9: memref<128x128xbf16, #tpu.memory_space<vmem>>, %arg10: memref<1x128xf32, #tpu.memory_space<vmem>>, %arg11: memref<1x8x16x128xbf16, #tpu.memory_space<vmem>>, %arg12: memref<10x16x384xbf16, #tpu.memory_space<vmem>>, %arg13: memref<128x128xf32, #tpu.memory_space<vmem>>) attributes {dimension_semantics = [#tpu.dimension_semantics<parallel>, #tpu.dimension_semantics<parallel>], iteration_bounds = array<i64: 2, 2>, scalar_prefetch = 0 : i64, scratch_operands = 2 : i64, tpu.core_type = #tpu.core_type<tc>, window_params = [{transform_indices = @transform_0, window_bounds = array<i64: 1, 1, 16, 4>}, {transform_indices = @transform_1, window_bounds = array<i64: 1, 8, 16, 4>}, {transform_indices = @transform_2, window_bounds = array<i64: 1, 1, 16, 4>}, {pipeline_mode = #tpu.pipeline_mode<synchronous>, transform_indices = @transform_3, window_bounds = array<i64: 4, 128>}, {pipeline_mode = #tpu.pipeline_mode<synchronous>, transform_indices = @transform_4, window_bounds = array<i64: 1, 128>}, {pipeline_mode = #tpu.pipeline_mode<synchronous>, transform_indices = @transform_5, window_bounds = array<i64: 3, 384, 128>}, {pipeline_mode = #tpu.pipeline_mode<synchronous>, transform_indices = @transform_6, window_bounds = array<i64: 1, 128>}, {pipeline_mode = #tpu.pipeline_mode<synchronous>, transform_indices = @transform_7, window_bounds = array<i64: 128, 128>}, {pipeline_mode = #tpu.pipeline_mode<synchronous>, transform_indices = @transform_8, window_bounds = array<i64: 1, 128>}, {transform_indices = @transform_9, window_bounds = array<i64: 1, 8, 16, 128>}]} {
    %c0 = arith.constant 0 : index
    %c0_0 = arith.constant 0 : index
    %c0_1 = arith.constant 0 : index
    %c0_2 = arith.constant 0 : index
    %0 = vector.load %arg2[%c0, %c0_0, %c0_1, %c0_2] : memref<1x1x16x4xbf16, #tpu.memory_space<vmem>>, vector<1x1x16x4xbf16>
    %1 = vector.shape_cast %0 : vector<1x1x16x4xbf16> to vector<1x16x4xbf16>
    %c0_3 = arith.constant 0 : index
    %c0_4 = arith.constant 0 : index
    %c0_5 = arith.constant 0 : index
    %c0_6 = arith.constant 0 : index
    %2 = vector.load %arg3[%c0_3, %c0_4, %c0_5, %c0_6] : memref<1x8x16x4xbf16, #tpu.memory_space<vmem>>, vector<1x8x16x4xbf16>
    %3 = vector.shape_cast %2 : vector<1x8x16x4xbf16> to vector<8x16x4xbf16>
    %c0_7 = arith.constant 0 : index
    %c0_8 = arith.constant 0 : index
    %c0_9 = arith.constant 0 : index
    %c0_10 = arith.constant 0 : index
    %4 = vector.load %arg4[%c0_7, %c0_8, %c0_9, %c0_10] : memref<1x1x16x4xbf16, #tpu.memory_space<vmem>>, vector<1x1x16x4xbf16>
    %5 = vector.shape_cast %4 : vector<1x1x16x4xbf16> to vector<1x16x4xbf16>
    %6 = tpu.concatenate %1, %3, %5 in 0 : vector<1x16x4xbf16>, vector<8x16x4xbf16>, vector<1x16x4xbf16> -> vector<10x16x4xbf16>
    %7 = vector.shape_cast %6 : vector<10x16x4xbf16> to vector<160x4xbf16>
    %c0_11 = arith.constant 0 : index
    %c0_12 = arith.constant 0 : index
    %8 = vector.load %arg5[%c0_11, %c0_12] : memref<4x128xbf16, #tpu.memory_space<vmem>>, vector<4x128xbf16>
    %cst = arith.constant dense<0.000000e+00> : vector<160x128xf32>
    %9 = tpu.matmul %7, %8, %cst {dimension_numbers = #tpu.dot_dimension_numbers<[1], [0], [0], [1], [0, 0, 1, 1], [], []>} : vector<160x4xbf16>, vector<4x128xbf16>, vector<160x128xf32> -> vector<160x128xf32>
    %c0_13 = arith.constant 0 : index
    %c0_14 = arith.constant 0 : index
    %10 = vector.load %arg6[%c0_13, %c0_14] : memref<1x128xf32, #tpu.memory_space<vmem>>, vector<1x128xf32>
    %11 = vector.broadcast %10 : vector<1x128xf32> to vector<160x128xf32>
    %12 = arith.addf %9, %11 : vector<160x128xf32>
    %cst_15 = arith.constant 0.000000e+00 : f32
    %13 = vector.broadcast %cst_15 : f32 to vector<160x128xf32>
    %14 = arith.maximumf %12, %13 : vector<160x128xf32>
    %15 = vector.shape_cast %14 : vector<160x128xf32> to vector<10x16x128xf32>
    %cst_16 = arith.constant 0.000000e+00 : f32
    %16 = vector.broadcast %cst_16 : f32 to vector<10x1x128xf32>
    %17 = vector.extract_strided_slice %15 {offsets = [0, 0, 0], sizes = [10, 15, 128], strides = [1, 1, 1]} : vector<10x16x128xf32> to vector<10x15x128xf32>
    %18 = tpu.concatenate %16, %17 in 1 : vector<10x1x128xf32>, vector<10x15x128xf32> -> vector<10x16x128xf32>
    %19 = vector.extract_strided_slice %15 {offsets = [0, 1, 0], sizes = [10, 15, 128], strides = [1, 1, 1]} : vector<10x16x128xf32> to vector<10x15x128xf32>
    %20 = tpu.concatenate %19, %16 in 1 : vector<10x15x128xf32>, vector<10x1x128xf32> -> vector<10x16x128xf32>
    %21 = tpu.concatenate %18, %15, %20 in 2 : vector<10x16x128xf32>, vector<10x16x128xf32>, vector<10x16x128xf32> -> vector<10x16x384xf32>
    %22 = arith.truncf %21 : vector<10x16x384xf32> to vector<10x16x384xbf16>
    %c0_17 = arith.constant 0 : index
    %c0_18 = arith.constant 0 : index
    %c0_19 = arith.constant 0 : index
    %23 = vector.load %arg12[%c0_17, %c0_18, %c0_19] : memref<10x16x384xbf16, #tpu.memory_space<vmem>>, vector<10x16x384xbf16>
    tpu.vector_store %arg12[%c0_17, %c0_18, %c0_19], %22 {strides = array<i32>} : memref<10x16x384xbf16, #tpu.memory_space<vmem>>, vector<10x16x384xbf16>,
    %cst_20 = arith.constant 0.000000e+00 : bf16
    %24 = vector.broadcast %cst_20 : bf16 to vector<1x16x384xbf16>
    %c0_i32 = arith.constant 0 : i32
    %25 = arith.cmpi eq, %arg1, %c0_i32 : i32
    %26 = arith.extui %25 : i1 to i32
    %c0_i32_21 = arith.constant 0 : i32
    %27 = arith.cmpi ne, %26, %c0_i32_21 : i32
    scf.if %27 {
      %c0_67 = arith.constant 0 : index
      %c0_68 = arith.constant 0 : index
      %c0_69 = arith.constant 0 : index
      %72 = vector.load %arg12[%c0_67, %c0_68, %c0_69] : memref<10x16x384xbf16, #tpu.memory_space<vmem>>, vector<1x16x384xbf16>
      tpu.vector_store %arg12[%c0_67, %c0_68, %c0_69], %24 {strides = array<i32>} : memref<10x16x384xbf16, #tpu.memory_space<vmem>>, vector<1x16x384xbf16>,
    } else {
    }
    %c1_i32 = arith.constant 1 : i32
    %28 = arith.cmpi eq, %arg1, %c1_i32 : i32
    %29 = arith.extui %28 : i1 to i32
    %c0_i32_22 = arith.constant 0 : i32
    %30 = arith.cmpi ne, %29, %c0_i32_22 : i32
    scf.if %30 {
      %c9 = arith.constant 9 : index
      %c0_67 = arith.constant 0 : index
      %c0_68 = arith.constant 0 : index
      %72 = vector.load %arg12[%c9, %c0_67, %c0_68] : memref<10x16x384xbf16, #tpu.memory_space<vmem>>, vector<1x16x384xbf16>
      tpu.vector_store %arg12[%c9, %c0_67, %c0_68], %24 {strides = array<i32>} : memref<10x16x384xbf16, #tpu.memory_space<vmem>>, vector<1x16x384xbf16>,
    } else {
    }
    %c0_23 = arith.constant 0 : index
    %c0_24 = arith.constant 0 : index
    %c0_25 = arith.constant 0 : index
    %31 = vector.load %arg12[%c0_23, %c0_24, %c0_25] : memref<10x16x384xbf16, #tpu.memory_space<vmem>>, vector<8x16x384xbf16>
    %32 = vector.shape_cast %31 : vector<8x16x384xbf16> to vector<128x384xbf16>
    %c0_26 = arith.constant 0 : index
    %c0_27 = arith.constant 0 : index
    %c0_28 = arith.constant 0 : index
    %33 = vector.load %arg7[%c0_26, %c0_27, %c0_28] : memref<3x384x128xbf16, #tpu.memory_space<vmem>>, vector<1x384x128xbf16>
    %34 = vector.shape_cast %33 : vector<1x384x128xbf16> to vector<384x128xbf16>
    %cst_29 = arith.constant dense<0.000000e+00> : vector<128x128xf32>
    %35 = tpu.matmul %32, %34, %cst_29 {dimension_numbers = #tpu.dot_dimension_numbers<[1], [0], [0], [1], [0, 0, 1, 1], [], []>} : vector<128x384xbf16>, vector<384x128xbf16>, vector<128x128xf32> -> vector<128x128xf32>
    %c0_30 = arith.constant 0 : index
    %c0_31 = arith.constant 0 : index
    %36 = vector.load %arg13[%c0_30, %c0_31] : memref<128x128xf32, #tpu.memory_space<vmem>>, vector<128x128xf32>
    tpu.vector_store %arg13[%c0_30, %c0_31], %35 {strides = array<i32>} : memref<128x128xf32, #tpu.memory_space<vmem>>, vector<128x128xf32>,
    %c1 = arith.constant 1 : index
    %c0_32 = arith.constant 0 : index
    %c0_33 = arith.constant 0 : index
    %37 = vector.load %arg12[%c1, %c0_32, %c0_33] : memref<10x16x384xbf16, #tpu.memory_space<vmem>>, vector<8x16x384xbf16>
    %38 = vector.shape_cast %37 : vector<8x16x384xbf16> to vector<128x384xbf16>
    %c1_34 = arith.constant 1 : index
    %c0_35 = arith.constant 0 : index
    %c0_36 = arith.constant 0 : index
    %39 = vector.load %arg7[%c1_34, %c0_35, %c0_36] : memref<3x384x128xbf16, #tpu.memory_space<vmem>>, vector<1x384x128xbf16>
    %40 = vector.shape_cast %39 : vector<1x384x128xbf16> to vector<384x128xbf16>
    %cst_37 = arith.constant dense<0.000000e+00> : vector<128x128xf32>
    %41 = tpu.matmul %38, %40, %cst_37 {dimension_numbers = #tpu.dot_dimension_numbers<[1], [0], [0], [1], [0, 0, 1, 1], [], []>} : vector<128x384xbf16>, vector<384x128xbf16>, vector<128x128xf32> -> vector<128x128xf32>
    %c0_38 = arith.constant 0 : index
    %c0_39 = arith.constant 0 : index
    %42 = vector.load %arg13[%c0_38, %c0_39] : memref<128x128xf32, #tpu.memory_space<vmem>>, vector<128x128xf32>
    %43 = arith.addf %42, %41 : vector<128x128xf32>
    %c0_40 = arith.constant 0 : index
    %c0_41 = arith.constant 0 : index
    %44 = vector.load %arg13[%c0_40, %c0_41] : memref<128x128xf32, #tpu.memory_space<vmem>>, vector<128x128xf32>
    tpu.vector_store %arg13[%c0_40, %c0_41], %43 {strides = array<i32>} : memref<128x128xf32, #tpu.memory_space<vmem>>, vector<128x128xf32>,
    %c2 = arith.constant 2 : index
    %c0_42 = arith.constant 0 : index
    %c0_43 = arith.constant 0 : index
    %45 = vector.load %arg12[%c2, %c0_42, %c0_43] : memref<10x16x384xbf16, #tpu.memory_space<vmem>>, vector<8x16x384xbf16>
    %46 = vector.shape_cast %45 : vector<8x16x384xbf16> to vector<128x384xbf16>
    %c2_44 = arith.constant 2 : index
    %c0_45 = arith.constant 0 : index
    %c0_46 = arith.constant 0 : index
    %47 = vector.load %arg7[%c2_44, %c0_45, %c0_46] : memref<3x384x128xbf16, #tpu.memory_space<vmem>>, vector<1x384x128xbf16>
    %48 = vector.shape_cast %47 : vector<1x384x128xbf16> to vector<384x128xbf16>
    %cst_47 = arith.constant dense<0.000000e+00> : vector<128x128xf32>
    %49 = tpu.matmul %46, %48, %cst_47 {dimension_numbers = #tpu.dot_dimension_numbers<[1], [0], [0], [1], [0, 0, 1, 1], [], []>} : vector<128x384xbf16>, vector<384x128xbf16>, vector<128x128xf32> -> vector<128x128xf32>
    %c0_48 = arith.constant 0 : index
    %c0_49 = arith.constant 0 : index
    %50 = vector.load %arg13[%c0_48, %c0_49] : memref<128x128xf32, #tpu.memory_space<vmem>>, vector<128x128xf32>
    %51 = arith.addf %50, %49 : vector<128x128xf32>
    %c0_50 = arith.constant 0 : index
    %c0_51 = arith.constant 0 : index
    %52 = vector.load %arg13[%c0_50, %c0_51] : memref<128x128xf32, #tpu.memory_space<vmem>>, vector<128x128xf32>
    tpu.vector_store %arg13[%c0_50, %c0_51], %51 {strides = array<i32>} : memref<128x128xf32, #tpu.memory_space<vmem>>, vector<128x128xf32>,
    %c0_52 = arith.constant 0 : index
    %c0_53 = arith.constant 0 : index
    %53 = vector.load %arg13[%c0_52, %c0_53] : memref<128x128xf32, #tpu.memory_space<vmem>>, vector<128x128xf32>
    %c0_54 = arith.constant 0 : index
    %c0_55 = arith.constant 0 : index
    %54 = vector.load %arg8[%c0_54, %c0_55] : memref<1x128xf32, #tpu.memory_space<vmem>>, vector<1x128xf32>
    %55 = vector.broadcast %54 : vector<1x128xf32> to vector<128x128xf32>
    %56 = arith.addf %53, %55 : vector<128x128xf32>
    %cst_56 = arith.constant 0.000000e+00 : f32
    %57 = vector.broadcast %cst_56 : f32 to vector<128x128xf32>
    %58 = arith.maximumf %56, %57 : vector<128x128xf32>
    %59 = arith.truncf %58 : vector<128x128xf32> to vector<128x128xbf16>
    %c0_57 = arith.constant 0 : index
    %c0_58 = arith.constant 0 : index
    %60 = vector.load %arg9[%c0_57, %c0_58] : memref<128x128xbf16, #tpu.memory_space<vmem>>, vector<128x128xbf16>
    %cst_59 = arith.constant dense<0.000000e+00> : vector<128x128xf32>
    %61 = tpu.matmul %59, %60, %cst_59 {dimension_numbers = #tpu.dot_dimension_numbers<[1], [0], [0], [1], [0, 0, 1, 1], [], []>} : vector<128x128xbf16>, vector<128x128xbf16>, vector<128x128xf32> -> vector<128x128xf32>
    %c0_60 = arith.constant 0 : index
    %c0_61 = arith.constant 0 : index
    %62 = vector.load %arg10[%c0_60, %c0_61] : memref<1x128xf32, #tpu.memory_space<vmem>>, vector<1x128xf32>
    %63 = vector.broadcast %62 : vector<1x128xf32> to vector<128x128xf32>
    %64 = arith.addf %61, %63 : vector<128x128xf32>
    %cst_62 = arith.constant 0.000000e+00 : f32
    %65 = vector.broadcast %cst_62 : f32 to vector<128x128xf32>
    %66 = arith.maximumf %64, %65 : vector<128x128xf32>
    %67 = vector.shape_cast %66 : vector<128x128xf32> to vector<8x16x128xf32>
    %68 = arith.truncf %67 : vector<8x16x128xf32> to vector<8x16x128xbf16>
    %c0_63 = arith.constant 0 : index
    %c0_64 = arith.constant 0 : index
    %c0_65 = arith.constant 0 : index
    %c0_66 = arith.constant 0 : index
    %69 = vector.load %arg11[%c0_63, %c0_64, %c0_65, %c0_66] : memref<1x8x16x128xbf16, #tpu.memory_space<vmem>>, vector<1x8x16x128xbf16>
    %70 = vector.shape_cast %69 : vector<1x8x16x128xbf16> to vector<8x16x128xbf16>
    %71 = vector.shape_cast %68 : vector<8x16x128xbf16> to vector<1x8x16x128xbf16>
    tpu.vector_store %arg11[%c0_63, %c0_64, %c0_65, %c0_66], %71 {strides = array<i32>} : memref<1x8x16x128xbf16, #tpu.memory_space<vmem>>, vector<1x8x16x128xbf16>,
    return
  }
  func.func @transform_0(%arg0: i32, %arg1: i32) -> (i32, i32, i32, i32) {
    %c8_i32 = arith.constant 8 : i32
    %0 = arith.muli %arg1, %c8_i32 : i32
    %c1_i32 = arith.constant 1 : i32
    %1 = arith.subi %0, %c1_i32 : i32
    %c0_i32 = arith.constant 0 : i32
    %2 = arith.maxsi %1, %c0_i32 : i32
    %c0_i32_0 = arith.constant 0 : i32
    %c0_i32_1 = arith.constant 0 : i32
    %c0_i32_2 = arith.constant 0 : i32
    return %arg0, %2, %c0_i32_0, %c0_i32_1 : i32, i32, i32, i32
  }
  func.func @transform_1(%arg0: i32, %arg1: i32) -> (i32, i32, i32, i32) {
    %c0_i32 = arith.constant 0 : i32
    %c0_i32_0 = arith.constant 0 : i32
    %c0_i32_1 = arith.constant 0 : i32
    return %arg0, %arg1, %c0_i32, %c0_i32_0 : i32, i32, i32, i32
  }
  func.func @transform_2(%arg0: i32, %arg1: i32) -> (i32, i32, i32, i32) {
    %c8_i32 = arith.constant 8 : i32
    %0 = arith.muli %arg1, %c8_i32 : i32
    %c8_i32_0 = arith.constant 8 : i32
    %1 = arith.addi %0, %c8_i32_0 : i32
    %c15_i32 = arith.constant 15 : i32
    %2 = arith.minsi %1, %c15_i32 : i32
    %c0_i32 = arith.constant 0 : i32
    %c0_i32_1 = arith.constant 0 : i32
    %c0_i32_2 = arith.constant 0 : i32
    return %arg0, %2, %c0_i32, %c0_i32_1 : i32, i32, i32, i32
  }
  func.func @transform_3(%arg0: i32, %arg1: i32) -> (i32, i32) {
    %c0_i32 = arith.constant 0 : i32
    %c0_i32_0 = arith.constant 0 : i32
    %c0_i32_1 = arith.constant 0 : i32
    return %c0_i32, %c0_i32_0 : i32, i32
  }
  func.func @transform_4(%arg0: i32, %arg1: i32) -> (i32, i32) {
    %c0_i32 = arith.constant 0 : i32
    %c0_i32_0 = arith.constant 0 : i32
    %c0_i32_1 = arith.constant 0 : i32
    return %c0_i32, %c0_i32_0 : i32, i32
  }
  func.func @transform_5(%arg0: i32, %arg1: i32) -> (i32, i32, i32) {
    %c0_i32 = arith.constant 0 : i32
    %c0_i32_0 = arith.constant 0 : i32
    %c0_i32_1 = arith.constant 0 : i32
    %c0_i32_2 = arith.constant 0 : i32
    return %c0_i32, %c0_i32_0, %c0_i32_1 : i32, i32, i32
  }
  func.func @transform_6(%arg0: i32, %arg1: i32) -> (i32, i32) {
    %c0_i32 = arith.constant 0 : i32
    %c0_i32_0 = arith.constant 0 : i32
    %c0_i32_1 = arith.constant 0 : i32
    return %c0_i32, %c0_i32_0 : i32, i32
  }
  func.func @transform_7(%arg0: i32, %arg1: i32) -> (i32, i32) {
    %c0_i32 = arith.constant 0 : i32
    %c0_i32_0 = arith.constant 0 : i32
    %c0_i32_1 = arith.constant 0 : i32
    return %c0_i32, %c0_i32_0 : i32, i32
  }
  func.func @transform_8(%arg0: i32, %arg1: i32) -> (i32, i32) {
    %c0_i32 = arith.constant 0 : i32
    %c0_i32_0 = arith.constant 0 : i32
    %c0_i32_1 = arith.constant 0 : i32
    return %c0_i32, %c0_i32_0 : i32, i32
  }
  func.func @transform_9(%arg0: i32, %arg1: i32) -> (i32, i32, i32, i32) {
    %c0_i32 = arith.constant 0 : i32
    %c0_i32_0 = arith.constant 0 : i32
    %c0_i32_1 = arith.constant 0 : i32
    return %arg0, %arg1, %c0_i32, %c0_i32_0 : i32, i32, i32, i32
  }
}

</mosaic_0001>

<llo_original>
// kernel: conv_block_forward.1
$region0: #{conv_block_forward.1}
  #allocation0 [shape = 'u32[]', space=smem, size = 0x4, offset = 0x4, fixed_abs, tag = 'smem constant byte address 0x4 - core index']
  #allocation1 [shape = 'u32[144,128]{1,0:T(1,128)}', space=vmem, size = 0x12000, scoped, tag = 'internal scratch']
  #allocation2 [shape = 'bf16[10,16,384]{2,1,0:T(16,128)(2,1)}', space=vmem, size = 0x1e000, scoped, tag = 'scratch operand']
  #allocation3 [shape = 'f32[128,128]{1,0:T(8,128)}', space=vmem, size = 0x10000, scoped, tag = 'scratch operand']
  %s0 = inlined_call_operand.vmem [shape: bf16[2,16,16,4], index: 0, kind: input, shape index: {}, may-alias: {0,1,2}]
  %s1 = inlined_call_operand.vmem [shape: bf16[2,16,16,4], index: 1, kind: input, shape index: {}, may-alias: {0,1,2}]
  %s2 = inlined_call_operand.vmem [shape: bf16[2,16,16,4], index: 2, kind: input, shape index: {}, may-alias: {0,1,2}]
  %s3 = inlined_call_operand.vmem [shape: bf16[4,128], index: 3, kind: input, shape index: {}]
  %s4 = inlined_call_operand.vmem [shape: f32[1,128], index: 4, kind: input, shape index: {}]
  %s5 = inlined_call_operand.vmem [shape: bf16[3,384,128], index: 5, kind: input, shape index: {}]
  %s6 = inlined_call_operand.vmem [shape: f32[1,128], index: 6, kind: input, shape index: {}]
  %s7 = inlined_call_operand.vmem [shape: bf16[128,128], index: 7, kind: input, shape index: {}]
  %s8 = inlined_call_operand.vmem [shape: f32[1,128], index: 8, kind: input, shape index: {}]
  %s9 = inlined_call_operand.vmem [shape: bf16[2,16,16,128], index: 9, kind: output, shape index: {}]
  %s10 = sld [smem:[#allocation0]]
  $region77: #{conv_block_forward.1} parent=0
    _
  %s12 = ssub.s32 1, %s10
  %s13 = scalar_select 0, %s12, %s10
  loop: start=0, step=1, limit=6
  $region2: #{conv_block_forward.1} parent=0 // loop_pre_header
    _
  $region3: #{conv_block_forward.1} parent=0 // loop_header
    %s15 = sphi 0, %s19
    %p16 = scmp.ge.s32.totalorder %s15, 6
    %s22 = sphi 0, %s34
    %s23 = sphi 0, %s30
    %s24 = sphi 0, %s22
    %s25 = sphi 0, %s23
    %s26 = sphi 0, %s24
    %s27 = sphi 0, %s25
    %s47 = sphi 0, %s49
    %s50 = sphi 0, %s47
    %s51 = sphi 0, %s50
    %s67 = sphi 0, %s51
    %s75 = sphi 0, %s77
    %s78 = sphi 0, %s75
    %s79 = sphi 0, %s78
    %s95 = sphi 0, %s79
    %s111 = sphi 0, %s113
    %s114 = sphi 0, %s111
    %s115 = sphi 0, %s114
    %s131 = sphi 0, %s115
    %s135 = sphi 0, %s135
    %s137 = sphi 0, %s135
    %s138 = sphi 0, %s137
    %s152 = sphi 0, %s138
    %s156 = sphi 0, %s156
    %s158 = sphi 0, %s156
    %s159 = sphi 0, %s158
    %s173 = sphi 0, %s159
    %s177 = sphi 0, %s177
    %s179 = sphi 0, %s177
    %s180 = sphi 0, %s179
    %s194 = sphi 0, %s180
    %s198 = sphi 0, %s198
    %s200 = sphi 0, %s198
    %s201 = sphi 0, %s200
    %s215 = sphi 0, %s201
    %s219 = sphi 0, %s219
    %s221 = sphi 0, %s219
    %s222 = sphi 0, %s221
    %s236 = sphi 0, %s222
    %s240 = sphi 0, %s240
    %s242 = sphi 0, %s240
    %s243 = sphi 0, %s242
    %s257 = sphi 0, %s243
    %s265 = sphi 0, %s267
    %s268 = sphi 0, %s265
    %s269 = sphi 0, %s268
    %s285 = sphi 0, %s269
  $region4: #{conv_block_forward.1} parent=0 // loop_header_branch
    %18 = sbr.rel (%p16) target = $region8
  $region5: #{conv_block_forward.1} parent=0 // loop_body
    %s20 = ssub.s32 %s15, 1
    %s21 = ssub.s32 %s15, 2
    %s28 = sadd.s32 1, %s23
    %p29 = scmp.ge.s32.totalorder %s28, 2
    %s30 = scalar_select %p29, 0, %s28
    %s31 = sadd.s32 1, %s22
    %s32 = scalar_select %p29, %s31, %s22
    %p33 = scmp.ge.s32.totalorder %s32, 2
    %s34 = scalar_select %p33, 0, %s32
    %s35 = smul.u32 %s23, 8
    %s36 = ssub.s32 %s35, 1
    %p37 = scmp.gt.s32.totalorder %s36, 0
    %s38 = scalar_select %p37, %s36, 0
    %s39 = smul.u32 %s30, 8
    %s40 = ssub.s32 %s39, 1
    %p41 = scmp.gt.s32.totalorder %s40, 0
    %s42 = scalar_select %p41, %s40, 0
    %s43 = ssub.s32 %s22, %s34
    %s44 = ssub.s32 %s38, %s42
    %s45 = sor.u32 %s43, %s44
    %p46 = scmp.eq.s32.totalorder %s45, 0
    %s48 = sadd.s32 %s47, 1
    %s49 = scalar_select %p46, %s47, %s48
    %p52 = pneg %p46
    %p53 = scmp.eq.s32.totalorder %s15, 3
    %p54 = por %p52, %p53
    %p55 = scmp.ne.s32.totalorder %s47, %s50
    %p56 = scmp.eq.s32.totalorder %s15, 0
    %p57 = por %p55, %p56
    %p58 = scmp.ne.s32.totalorder %s47, %s50
    %p59 = scmp.eq.s32.totalorder %s20, 3
    %p60 = por %p58, %p59
    %p61 = scmp.ne.s32.totalorder %s50, %s51
    %p62 = scmp.eq.s32.totalorder %s20, 0
    %p63 = por %p61, %p62
    %p64 = scmp.ne.s32.totalorder %s50, %s51
    %p65 = scmp.eq.s32.totalorder %s21, 3
    %p66 = por %p64, %p65
    %p68 = scmp.ne.s32.totalorder %s51, %s67
    %p69 = scmp.eq.s32.totalorder %s21, 0
    %p70 = por %p68, %p69
    %s71 = ssub.s32 %s22, %s34
    %s72 = ssub.s32 %s23, %s30
    %s73 = sor.u32 %s71, %s72
    %p74 = scmp.eq.s32.totalorder %s73, 0
    %s76 = sadd.s32 %s75, 1
    %s77 = scalar_select %p74, %s75, %s76
    %p80 = pneg %p74
    %p81 = scmp.eq.s32.totalorder %s15, 3
    %p82 = por %p80, %p81
    %p83 = scmp.ne.s32.totalorder %s75, %s78
    %p84 = scmp.eq.s32.totalorder %s15, 0
    %p85 = por %p83, %p84
    %p86 = scmp.ne.s32.totalorder %s75, %s78
    %p87 = scmp.eq.s32.totalorder %s20, 3
    %p88 = por %p86, %p87
    %p89 = scmp.ne.s32.totalorder %s78, %s79
    %p90 = scmp.eq.s32.totalorder %s20, 0
    %p91 = por %p89, %p90
    %p92 = scmp.ne.s32.totalorder %s78, %s79
    %p93 = scmp.eq.s32.totalorder %s21, 3
    %p94 = por %p92, %p93
    %p96 = scmp.ne.s32.totalorder %s79, %s95
    %p97 = scmp.eq.s32.totalorder %s21, 0
    %p98 = por %p96, %p97
    %s99 = smul.u32 %s23, 8
    %s100 = sadd.s32 %s99, 8
    %p101 = scmp.lt.s32.totalorder %s100, 15
    %s102 = scalar_select %p101, %s100, 15
    %s103 = smul.u32 %s30, 8
    %s104 = sadd.s32 %s103, 8
    %p105 = scmp.lt.s32.totalorder %s104, 15
    %s106 = scalar_select %p105, %s104, 15
    %s107 = ssub.s32 %s22, %s34
    %s108 = ssub.s32 %s102, %s106
    %s109 = sor.u32 %s107, %s108
    %p110 = scmp.eq.s32.totalorder %s109, 0
    %s112 = sadd.s32 %s111, 1
    %s113 = scalar_select %p110, %s111, %s112
    %p116 = pneg %p110
    %p117 = scmp.eq.s32.totalorder %s15, 3
    %p118 = por %p116, %p117
    %p119 = scmp.ne.s32.totalorder %s111, %s114
    %p120 = scmp.eq.s32.totalorder %s15, 0
    %p121 = por %p119, %p120
    %p122 = scmp.ne.s32.totalorder %s111, %s114
    %p123 = scmp.eq.s32.totalorder %s20, 3
    %p124 = por %p122, %p123
    %p125 = scmp.ne.s32.totalorder %s114, %s115
    %p126 = scmp.eq.s32.totalorder %s20, 0
    %p127 = por %p125, %p126
    %p128 = scmp.ne.s32.totalorder %s114, %s115
    %p129 = scmp.eq.s32.totalorder %s21, 3
    %p130 = por %p128, %p129
    %p132 = scmp.ne.s32.totalorder %s115, %s131
    %p133 = scmp.eq.s32.totalorder %s21, 0
    %p134 = por %p132, %p133
    %s136 = sadd.s32 %s135, 1
    %p139 = scmp.eq.s32.totalorder %s15, 3
    %p140 = scmp.ne.s32.totalorder %s135, %s137
    %p141 = scmp.eq.s32.totalorder %s15, 0
    %p142 = por %p140, %p141
    %p143 = scmp.ne.s32.totalorder %s135, %s137
    %p144 = scmp.eq.s32.totalorder %s20, 3
    %p145 = por %p143, %p144
    %p146 = scmp.ne.s32.totalorder %s137, %s138
    %p147 = scmp.eq.s32.totalorder %s20, 0
    %p148 = por %p146, %p147
    %p149 = scmp.ne.s32.totalorder %s137, %s138
    %p150 = scmp.eq.s32.totalorder %s21, 3
    %p151 = por %p149, %p150
    %p153 = scmp.ne.s32.totalorder %s138, %s152
    %p154 = scmp.eq.s32.totalorder %s21, 0
    %p155 = por %p153, %p154
    %s157 = sadd.s32 %s156, 1
    %p160 = scmp.eq.s32.totalorder %s15, 3
    %p161 = scmp.ne.s32.totalorder %s156, %s158
    %p162 = scmp.eq.s32.totalorder %s15, 0
    %p163 = por %p161, %p162
    %p164 = scmp.ne.s32.totalorder %s156, %s158
    %p165 = scmp.eq.s32.totalorder %s20, 3
    %p166 = por %p164, %p165
    %p167 = scmp.ne.s32.totalorder %s158, %s159
    %p168 = scmp.eq.s32.totalorder %s20, 0
    %p169 = por %p167, %p168
    %p170 = scmp.ne.s32.totalorder %s158, %s159
    %p171 = scmp.eq.s32.totalorder %s21, 3
    %p172 = por %p170, %p171
    %p174 = scmp.ne.s32.totalorder %s159, %s173
    %p175 = scmp.eq.s32.totalorder %s21, 0
    %p176 = por %p174, %p175
    %s178 = sadd.s32 %s177, 1
    %p181 = scmp.eq.s32.totalorder %s15, 3
    %p182 = scmp.ne.s32.totalorder %s177, %s179
    %p183 = scmp.eq.s32.totalorder %s15, 0
    %p184 = por %p182, %p183
    %p185 = scmp.ne.s32.totalorder %s177, %s179
    %p186 = scmp.eq.s32.totalorder %s20, 3
    %p187 = por %p185, %p186
    %p188 = scmp.ne.s32.totalorder %s179, %s180
    %p189 = scmp.eq.s32.totalorder %s20, 0
    %p190 = por %p188, %p189
    %p191 = scmp.ne.s32.totalorder %s179, %s180
    %p192 = scmp.eq.s32.totalorder %s21, 3
    %p193 = por %p191, %p192
    %p195 = scmp.ne.s32.totalorder %s180, %s194
    %p196 = scmp.eq.s32.totalorder %s21, 0
    %p197 = por %p195, %p196
    %s199 = sadd.s32 %s198, 1
    %p202 = scmp.eq.s32.totalorder %s15, 3
    %p203 = scmp.ne.s32.totalorder %s198, %s200
    %p204 = scmp.eq.s32.totalorder %s15, 0
    %p205 = por %p203, %p204
    %p206 = scmp.ne.s32.totalorder %s198, %s200
    %p207 = scmp.eq.s32.totalorder %s20, 3
    %p208 = por %p206, %p207
    %p209 = scmp.ne.s32.totalorder %s200, %s201
    %p210 = scmp.eq.s32.totalorder %s20, 0
    %p211 = por %p209, %p210
    %p212 = scmp.ne.s32.totalorder %s200, %s201
    %p213 = scmp.eq.s32.totalorder %s21, 3
    %p214 = por %p212, %p213
    %p216 = scmp.ne.s32.totalorder %s201, %s215
    %p217 = scmp.eq.s32.totalorder %s21, 0
    %p218 = por %p216, %p217
    %s220 = sadd.s32 %s219, 1
    %p223 = scmp.eq.s32.totalorder %s15, 3
    %p224 = scmp.ne.s32.totalorder %s219, %s221
    %p225 = scmp.eq.s32.totalorder %s15, 0
    %p226 = por %p224, %p225
    %p227 = scmp.ne.s32.totalorder %s219, %s221
    %p228 = scmp.eq.s32.totalorder %s20, 3
    %p229 = por %p227, %p228
    %p230 = scmp.ne.s32.totalorder %s221, %s222
    %p231 = scmp.eq.s32.totalorder %s20, 0
    %p232 = por %p230, %p231
    %p233 = scmp.ne.s32.totalorder %s221, %s222
    %p234 = scmp.eq.s32.totalorder %s21, 3
    %p235 = por %p233, %p234
    %p237 = scmp.ne.s32.totalorder %s222, %s236
    %p238 = scmp.eq.s32.totalorder %s21, 0
    %p239 = por %p237, %p238
    %s241 = sadd.s32 %s240, 1
    %p244 = scmp.eq.s32.totalorder %s15, 3
    %p245 = scmp.ne.s32.totalorder %s240, %s242
    %p246 = scmp.eq.s32.totalorder %s15, 0
    %p247 = por %p245, %p246
    %p248 = scmp.ne.s32.totalorder %s240, %s242
    %p249 = scmp.eq.s32.totalorder %s20, 3
    %p250 = por %p248, %p249
    %p251 = scmp.ne.s32.totalorder %s242, %s243
    %p252 = scmp.eq.s32.totalorder %s20, 0
    %p253 = por %p251, %p252
    %p254 = scmp.ne.s32.totalorder %s242, %s243
    %p255 = scmp.eq.s32.totalorder %s21, 3
    %p256 = por %p254, %p255
    %p258 = scmp.ne.s32.totalorder %s243, %s257
    %p259 = scmp.eq.s32.totalorder %s21, 0
    %p260 = por %p258, %p259
    %s261 = ssub.s32 %s22, %s34
    %s262 = ssub.s32 %s23, %s30
    %s263 = sor.u32 %s261, %s262
    %p264 = scmp.eq.s32.totalorder %s263, 0
    %s266 = sadd.s32 %s265, 1
    %s267 = scalar_select %p264, %s265, %s266
    %p270 = pneg %p264
    %p271 = scmp.eq.s32.totalorder %s15, 3
    %p272 = por %p270, %p271
    %p273 = scmp.ne.s32.totalorder %s265, %s268
    %p274 = scmp.eq.s32.totalorder %s15, 0
    %p275 = por %p273, %p274
    %p276 = scmp.ne.s32.totalorder %s265, %s268
    %p277 = scmp.eq.s32.totalorder %s20, 3
    %p278 = por %p276, %p277
    %p279 = scmp.ne.s32.totalorder %s268, %s269
    %p280 = scmp.eq.s32.totalorder %s20, 0
    %p281 = por %p279, %p280
    %p282 = scmp.ne.s32.totalorder %s268, %s269
    %p283 = scmp.eq.s32.totalorder %s21, 3
    %p284 = por %p282, %p283
    %p286 = scmp.ne.s32.totalorder %s269, %s285
    %p287 = scmp.eq.s32.totalorder %s21, 0
    %p288 = por %p286, %p287
    %p289 = scmp.le.s32.totalorder 1, %s15
    %p290 = scmp.lt.s32.totalorder %s15, 5
    %p291 = pnand %p289, %p290
    %p292 = pneg %p291
    // Predicated region
    $region9: #{conv_block_forward.1} parent=5 // pred_check
      _
    $region10: #{conv_block_forward.1} parent=5 // pred_check_branch
      %294 = sbr.rel (%p291) target = $region12
    $region11: #{conv_block_forward.1} parent=5 // pred_region
      %s295 = ssub.s32 %s15, 1
      // Predicated region
      $region13: #{conv_block_forward.1} parent=11 // pred_check
        %p296 = pneg %p148
      $region14: #{conv_block_forward.1} parent=11 // pred_check_branch
        %298 = sbr.rel (%p296) target = $region16
      $region15: #{conv_block_forward.1} parent=11 // pred_region
        _
      $region16: #{conv_block_forward.1} parent=11 // pred_fallthru
        _
      // Predicated region
      $region17: #{conv_block_forward.1} parent=11 // pred_check
        %p299 = pneg %p169
      $region18: #{conv_block_forward.1} parent=11 // pred_check_branch
        %301 = sbr.rel (%p299) target = $region20
      $region19: #{conv_block_forward.1} parent=11 // pred_region
        _
      $region20: #{conv_block_forward.1} parent=11 // pred_fallthru
        _
      // Predicated region
      $region21: #{conv_block_forward.1} parent=11 // pred_check
        %p302 = pneg %p190
      $region22: #{conv_block_forward.1} parent=11 // pred_check_branch
        %304 = sbr.rel (%p302) target = $region24
      $region23: #{conv_block_forward.1} parent=11 // pred_region
        _
      $region24: #{conv_block_forward.1} parent=11 // pred_fallthru
        _
      // Predicated region
      $region25: #{conv_block_forward.1} parent=11 // pred_check
        %p305 = pneg %p211
      $region26: #{conv_block_forward.1} parent=11 // pred_check_branch
        %307 = sbr.rel (%p305) target = $region28
      $region27: #{conv_block_forward.1} parent=11 // pred_region
        _
      $region28: #{conv_block_forward.1} parent=11 // pred_fallthru
        _
      // Predicated region
      $region29: #{conv_block_forward.1} parent=11 // pred_check
        %p308 = pneg %p232
      $region30: #{conv_block_forward.1} parent=11 // pred_check_branch
        %310 = sbr.rel (%p308) target = $region32
      $region31: #{conv_block_forward.1} parent=11 // pred_region
        _
      $region32: #{conv_block_forward.1} parent=11 // pred_fallthru
        _
      // Predicated region
      $region33: #{conv_block_forward.1} parent=11 // pred_check
        %p311 = pneg %p253
      $region34: #{conv_block_forward.1} parent=11 // pred_check_branch
        %313 = sbr.rel (%p311) target = $region36
      $region35: #{conv_block_forward.1} parent=11 // pred_region
        _
      $region36: #{conv_block_forward.1} parent=11 // pred_fallthru
        _
    $region12: #{conv_block_forward.1} parent=5 // pred_fallthru
      _
    %p314 = scmp.lt.s32.totalorder %s15, 4
    // Predicated region
    $region37: #{conv_block_forward.1} parent=5 // pred_check
      %p315 = pneg %p314
    $region38: #{conv_block_forward.1} parent=5 // pred_check_branch
      %317 = sbr.rel (%p315) target = $region40
    $region39: #{conv_block_forward.1} parent=5 // pred_region
      // Predicated region
      $region41: #{conv_block_forward.1} parent=39 // pred_check
        %p318 = pneg %p57
      $region42: #{conv_block_forward.1} parent=39 // pred_check_branch
        %320 = sbr.rel (%p318) target = $region44
      $region43: #{conv_block_forward.1} parent=39 // pred_region
        %s321 = smul.u32 %s23, 8
        %s322 = ssub.s32 %s321, 1
        %p323 = scmp.gt.s32.totalorder %s322, 0
        %s324 = scalar_select %p323, %s322, 0
        %p325 = scmp.lt.s32.totalorder %s22, 1
        %s326 = scalar_select %p325, %s22, 1
        %p327 = scmp.lt.s32.totalorder %s324, 15
        %s328 = scalar_select %p327, %s324, 15
        %s329 = smul.addr %s328, 2
        %s330 = smul.addr %s326, 32
        %s331 = sadd.s32 %s329, %s330
        %s332 = smul.addr %s331, 4
        %s333 = scalar_lea.vmem %s0, %s332
        %s334 = smul.u32 %s23, 8
        %s335 = ssub.s32 %s334, 1
        %p336 = scmp.gt.s32.totalorder %s335, 0
        %s337 = scalar_select %p336, %s335, 0
      $region44: #{conv_block_forward.1} parent=39 // pred_fallthru
        _
      // Predicated region
      $region45: #{conv_block_forward.1} parent=39 // pred_check
        %p338 = pneg %p85
      $region46: #{conv_block_forward.1} parent=39 // pred_check_branch
        %340 = sbr.rel (%p338) target = $region48
      $region47: #{conv_block_forward.1} parent=39 // pred_region
        %s341 = smul.u32 8, %s23
        %p342 = scmp.lt.s32.totalorder %s22, 1
        %s343 = scalar_select %p342, %s22, 1
        %p344 = scmp.lt.s32.totalorder %s341, 15
        %s345 = scalar_select %p344, %s341, 15
        %s346 = smul.addr %s345, 2
        %s347 = smul.addr %s343, 32
        %s348 = sadd.s32 %s346, %s347
        %s349 = smul.addr %s348, 4
        %s350 = scalar_lea.vmem %s1, %s349
        %s351 = smul.u32 8, %s23
      $region48: #{conv_block_forward.1} parent=39 // pred_fallthru
        _
      // Predicated region
      $region49: #{conv_block_forward.1} parent=39 // pred_check
        %p352 = pneg %p121
      $region50: #{conv_block_forward.1} parent=39 // pred_check_branch
        %354 = sbr.rel (%p352) target = $region52
      $region51: #{conv_block_forward.1} parent=39 // pred_region
        %s355 = smul.u32 %s23, 8
        %s356 = sadd.s32 %s355, 8
        %p357 = scmp.lt.s32.totalorder %s356, 15
        %s358 = scalar_select %p357, %s356, 15
        %p359 = scmp.lt.s32.totalorder %s22, 1
        %s360 = scalar_select %p359, %s22, 1
        %p361 = scmp.lt.s32.totalorder %s358, 15
        %s362 = scalar_select %p361, %s358, 15
        %s363 = smul.addr %s362, 2
        %s364 = smul.addr %s360, 32
        %s365 = sadd.s32 %s363, %s364
        %s366 = smul.addr %s365, 4
        %s367 = scalar_lea.vmem %s2, %s366
        %s368 = smul.u32 %s23, 8
        %s369 = sadd.s32 %s368, 8
        %p370 = scmp.lt.s32.totalorder %s369, 15
        %s371 = scalar_select %p370, %s369, 15
      $region52: #{conv_block_forward.1} parent=39 // pred_fallthru
        _
    $region40: #{conv_block_forward.1} parent=5 // pred_fallthru
      _
    %p372 = scmp.le.s32.totalorder 1, %s15
    %p373 = scmp.lt.s32.totalorder %s15, 5
    %p374 = pnand %p372, %p373
    %p375 = pneg %p374
    // Predicated region
    $region53: #{conv_block_forward.1} parent=5 // pred_check
      _
    $region54: #{conv_block_forward.1} parent=5 // pred_check_branch
      %377 = sbr.rel (%p374) target = $region56
    $region55: #{conv_block_forward.1} parent=5 // pred_region
      %s378 = ssub.s32 %s15, 1
      %s379 = smul.u32 %s25, 8
      %s380 = ssub.s32 %s379, 1
      %p381 = scmp.gt.s32.totalorder %s380, 0
      %s382 = scalar_select %p381, %s380, 0
      %p383 = scmp.lt.s32.totalorder %s24, 1
      %s384 = scalar_select %p383, %s24, 1
      %p385 = scmp.lt.s32.totalorder %s382, 15
      %s386 = scalar_select %p385, %s382, 15
      %s387 = smul.addr %s386, 2
      %s388 = smul.addr %s384, 32
      %s389 = sadd.s32 %s387, %s388
      %s390 = smul.addr %s389, 4
      %s391 = scalar_lea.vmem %s0, %s390
      %p392 = pneg %p63
      %p393 = pneg %p60
      %s394 = smul.u32 8, %s25
      %p395 = scmp.lt.s32.totalorder %s24, 1
      %s396 = scalar_select %p395, %s24, 1
      %p397 = scmp.lt.s32.totalorder %s394, 15
      %s398 = scalar_select %p397, %s394, 15
      %s399 = smul.addr %s398, 2
      %s400 = smul.addr %s396, 32
      %s401 = sadd.s32 %s399, %s400
      %s402 = smul.addr %s401, 4
      %s403 = scalar_lea.vmem %s1, %s402
      %p404 = pneg %p91
      %p405 = pneg %p88
      %s406 = smul.u32 %s25, 8
      %s407 = sadd.s32 %s406, 8
      %p408 = scmp.lt.s32.totalorder %s407, 15
      %s409 = scalar_select %p408, %s407, 15
      %p410 = scmp.lt.s32.totalorder %s24, 1
      %s411 = scalar_select %p410, %s24, 1
      %p412 = scmp.lt.s32.totalorder %s409, 15
      %s413 = scalar_select %p412, %s409, 15
      %s414 = smul.addr %s413, 2
      %s415 = smul.addr %s411, 32
      %s416 = sadd.s32 %s414, %s415
      %s417 = smul.addr %s416, 4
      %s418 = scalar_lea.vmem %s2, %s417
      %p419 = pneg %p127
      %p420 = pneg %p124
      %p421 = pneg %p148
      %p422 = pneg %p145
      %p423 = pneg %p169
      %p424 = pneg %p166
      %p425 = pneg %p190
      %p426 = pneg %p187
      %p427 = pneg %p211
      %p428 = pneg %p208
      %p429 = pneg %p232
      %p430 = pneg %p229
      %p431 = pneg %p253
      %p432 = pneg %p250
      %p433 = pneg %p281
      %p434 = pneg %p278
      %s435 = smul.u32 8, %s25
      %p436 = scmp.lt.s32.totalorder %s24, 1
      %s437 = scalar_select %p436, %s24, 1
      %p438 = scmp.lt.s32.totalorder %s435, 15
      %s439 = scalar_select %p438, %s435, 15
      %s440 = smul.addr %s439, 2
      %s441 = smul.addr %s437, 32
      %s442 = sadd.s32 %s440, %s441
      %s443 = smul.addr %s442, 4
      %s444 = scalar_lea.vmem %s9, %s443
      %s445 = smul.u32 %s25, 8
      %s446 = ssub.s32 %s445, 1
      %p447 = scmp.gt.s32.totalorder %s446, 0
      %s448 = scalar_select %p447, %s446, 0
      %p449 = scmp.lt.s32.totalorder %s24, 1
      %s450 = scalar_select %p449, %s24, 1
      %p451 = scmp.lt.s32.totalorder %s448, 15
      %s452 = scalar_select %p451, %s448, 15
      %s453 = smul.addr %s452, 2
      %s454 = smul.addr %s450, 32
      %s455 = sadd.s32 %s453, %s454
      %s456 = smul.addr %s455, 4
      %s457 = scalar_lea.vmem %s0, %s456
      %s458 = smul.u32 %s25, 8
      %s459 = ssub.s32 %s458, 1
      %p460 = scmp.gt.s32.totalorder %s459, 0
      %s461 = scalar_select %p460, %s459, 0
      %s462 = smul.u32 8, %s25
      %p463 = scmp.lt.s32.totalorder %s24, 1
      %s464 = scalar_select %p463, %s24, 1
      %p465 = scmp.lt.s32.totalorder %s462, 15
      %s466 = scalar_select %p465, %s462, 15
      %s467 = smul.addr %s466, 2
      %s468 = smul.addr %s464, 32
      %s469 = sadd.s32 %s467, %s468
      %s470 = smul.addr %s469, 4
      %s471 = scalar_lea.vmem %s1, %s470
      %s472 = smul.u32 8, %s25
      %s473 = smul.u32 %s25, 8
      %s474 = sadd.s32 %s473, 8
      %p475 = scmp.lt.s32.totalorder %s474, 15
      %s476 = scalar_select %p475, %s474, 15
      %p477 = scmp.lt.s32.totalorder %s24, 1
      %s478 = scalar_select %p477, %s24, 1
      %p479 = scmp.lt.s32.totalorder %s476, 15
      %s480 = scalar_select %p479, %s476, 15
      %s481 = smul.addr %s480, 2
      %s482 = smul.addr %s478, 32
      %s483 = sadd.s32 %s481, %s482
      %s484 = smul.addr %s483, 4
      %s485 = scalar_lea.vmem %s2, %s484
      %s486 = smul.u32 %s25, 8
      %s487 = sadd.s32 %s486, 8
      %p488 = scmp.lt.s32.totalorder %s487, 15
      %s489 = scalar_select %p488, %s487, 15
      %s490 = smul.u32 8, %s25
      %p491 = scmp.lt.s32.totalorder %s24, 1
      %s492 = scalar_select %p491, %s24, 1
      %p493 = scmp.lt.s32.totalorder %s490, 15
      %s494 = scalar_select %p493, %s490, 15
      %s495 = smul.addr %s494, 2
      %s496 = smul.addr %s492, 32
      %s497 = sadd.s32 %s495, %s496
      %s498 = smul.addr %s497, 4
      %s499 = scalar_lea.vmem %s9, %s498
      %s500 = smul.u32 8, %s25
      %v502 = vld [vmem:[%s457] sm:$0xf]
      %v503 = vld [vmem:[%s457 + $0x4] sm:$0xf]
      %v504 = vld [vmem:[%s471] sm:$0xf]
      %v505 = vld [vmem:[%s471 + $0x4] sm:$0xf]
      %v506 = vld [vmem:[%s471 + $0x8] sm:$0xf]
      %v507 = vld [vmem:[%s471 + $0xc] sm:$0xf]
      %v508 = vld [vmem:[%s471 + $0x10] sm:$0xf]
      %v509 = vld [vmem:[%s471 + $0x14] sm:$0xf]
      %v510 = vld [vmem:[%s471 + $0x18] sm:$0xf]
      %v511 = vld [vmem:[%s471 + $0x1c] sm:$0xf]
      %v512 = vld [vmem:[%s471 + $0x20] sm:$0xf]
      %v513 = vld [vmem:[%s471 + $0x24] sm:$0xf]
      %v514 = vld [vmem:[%s471 + $0x28] sm:$0xf]
      %v515 = vld [vmem:[%s471 + $0x2c] sm:$0xf]
      %v516 = vld [vmem:[%s471 + $0x30] sm:$0xf]
      %v517 = vld [vmem:[%s471 + $0x34] sm:$0xf]
      %v518 = vld [vmem:[%s471 + $0x38] sm:$0xf]
      %v519 = vld [vmem:[%s471 + $0x3c] sm:$0xf]
      %v520 = vld [vmem:[%s485] sm:$0xf]
      %v521 = vld [vmem:[%s485 + $0x4] sm:$0xf]
      %v522 = vld [vmem:[%s3] sm:$0x3]
      %v523 = vld [vmem:[%s4] sm:$0x1]
      %v525 = vlaneseq
      %v526 = vshrl.u32 %v525, 7
      %v527 = vsub.s32 0, %v526
      %v528 = vrot.slane %v523, %v527
      %v550 = vunpack.c.l.b16 %v502
      %v551 = vunpack.c.l.b16 %v503
      %v552 = vunpack.c.l.b16 %v504
      %v553 = vunpack.c.l.b16 %v505
      %v554 = vunpack.c.l.b16 %v506
      %v555 = vunpack.c.l.b16 %v507
      %v556 = vunpack.c.l.b16 %v508
      %v557 = vunpack.c.l.b16 %v509
      %v558 = vunpack.c.l.b16 %v510
      %v559 = vunpack.c.l.b16 %v511
      %v560 = vunpack.c.l.b16 %v512
      %v561 = vunpack.c.l.b16 %v513
      %v562 = vunpack.c.l.b16 %v514
      %v563 = vunpack.c.l.b16 %v515
      %v564 = vunpack.c.l.b16 %v516
      %v565 = vunpack.c.l.b16 %v517
      %v566 = vunpack.c.l.b16 %v518
      %v567 = vunpack.c.l.b16 %v519
      %v568 = vunpack.c.l.b16 %v520
      %v569 = vunpack.c.l.b16 %v521
      %v570 = vpack.c.b16 %v551, %v550
      %v571 = vpack.c.b16 %v553, %v552
      %v572 = vpack.c.b16 %v555, %v554
      %v573 = vpack.c.b16 %v557, %v556
      %v574 = vpack.c.b16 %v559, %v558
      %v575 = vpack.c.b16 %v561, %v560
      %v576 = vpack.c.b16 %v563, %v562
      %v577 = vpack.c.b16 %v565, %v564
      %v578 = vpack.c.b16 %v567, %v566
      %v579 = vpack.c.b16 %v569, %v568
      %vm580 = vcmask 31744
      %v582 = vsel %vm580, %v570, 0
      %v585 = vsel %vm580, %v571, 0
      %v588 = vsel %vm580, %v572, 0
      %v591 = vsel %vm580, %v573, 0
      %v594 = vsel %vm580, %v574, 0
      %v597 = vsel %vm580, %v575, 0
      %v600 = vsel %vm580, %v576, 0
      %v603 = vsel %vm580, %v577, 0
      %v606 = vsel %vm580, %v578, 0
      %v609 = vsel %vm580, %v579, 0
      %vm611 = vcmask 1041408
      %v613 = vsel %vm611, %v522, 0
      %615 = vmatprep.subr.bf16.mxu0 0
      %616 = vmatpush1.bf16.msra.mxu0 %v613
      %617 = vmatprep.subr.bf16.mxu0 0
      %618 = vmatpush1.bf16.msra.mxu0 0
      %619 = vmatprep.subr.bf16.mxu0 0
      %620 = vmatpush1.bf16.msra.mxu0 0
      %621 = vmatprep.subr.bf16.mxu0 0
      %622 = vmatpush1.bf16.msra.mxu0 0
      %623 = vmatprep.subr.bf16.mxu0 0
      %624 = vmatpush1.bf16.msra.mxu0 0
      %625 = vmatprep.subr.bf16.mxu0 0
      %626 = vmatpush1.bf16.msra.mxu0 0
      %627 = vmatprep.subr.bf16.mxu0 0
      %628 = vmatpush1.bf16.msra.mxu0 0
      %629 = vmatprep.subr.bf16.mxu0 0
      %630 = vmatpush1.bf16.msra.mxu0 0
      %631 = vmatprep.subr.bf16.mxu0 0
      %632 = vmatpush1.bf16.msra.mxu0 0
      %633 = vmatprep.subr.bf16.mxu0 0
      %634 = vmatpush1.bf16.msra.mxu0 0
      %635 = vmatprep.subr.bf16.mxu0 0
      %636 = vmatpush1.bf16.msra.mxu0 0
      %637 = vmatprep.subr.bf16.mxu0 0
      %638 = vmatpush1.bf16.msra.mxu0 0
      %639 = vmatprep.subr.bf16.mxu0 0
      %640 = vmatpush1.bf16.msra.mxu0 0
      %641 = vmatprep.subr.bf16.mxu0 0
      %642 = vmatpush1.bf16.msra.mxu0 0
      %643 = vmatprep.subr.bf16.mxu0 0
      %644 = vmatpush1.bf16.msra.mxu0 0
      %645 = vmatprep.subr.bf16.mxu0 0
      %646 = vmatpush1.bf16.msra.mxu0 0
      %647 = vmatprep.mubr.bf16.mxu0 0
      %648 = vmatmul.mubr.bf16.gmra.mrb[0].mxu0 %v582
      %v649 = vpop.f32.mrb[0].mxu0
      %v650 = vadd.f32 %v528, %v649
      %v651 = vpop.f32.mrb[0].mxu0
      %v652 = vpop.f32.mrb[0].mxu0
      %v653 = vadd.f32 %v528, %v652
      %v654 = vpop.f32.mrb[0].mxu0
      %655 = vmatprep.mubr.bf16.mxu0 0
      %656 = vmatmul.mubr.bf16.gmra.mrb[0].mxu0 %v585
      %v657 = vpop.f32.mrb[0].mxu0
      %v658 = vadd.f32 %v528, %v657
      %v659 = vpop.f32.mrb[0].mxu0
      %v660 = vpop.f32.mrb[0].mxu0
      %v661 = vadd.f32 %v528, %v660
      %v662 = vpop.f32.mrb[0].mxu0
      %663 = vmatprep.mubr.bf16.mxu0 0
      %664 = vmatmul.mubr.bf16.gmra.mrb[0].mxu0 %v588
      %v665 = vpop.f32.mrb[0].mxu0
      %v666 = vadd.f32 %v528, %v665
      %v667 = vpop.f32.mrb[0].mxu0
      %v668 = vpop.f32.mrb[0].mxu0
      %v669 = vadd.f32 %v528, %v668
      %v670 = vpop.f32.mrb[0].mxu0
      %671 = vmatprep.mubr.bf16.mxu0 0
      %672 = vmatmul.mubr.bf16.gmra.mrb[0].mxu0 %v591
      %v673 = vpop.f32.mrb[0].mxu0
      %v674 = vadd.f32 %v528, %v673
      %v675 = vpop.f32.mrb[0].mxu0
      %v676 = vpop.f32.mrb[0].mxu0
      %v677 = vadd.f32 %v528, %v676
      %v678 = vpop.f32.mrb[0].mxu0
      %679 = vmatprep.mubr.bf16.mxu0 0
      %680 = vmatmul.mubr.bf16.gmra.mrb[0].mxu0 %v594
      %v681 = vpop.f32.mrb[0].mxu0
      %v682 = vadd.f32 %v528, %v681
      %v683 = vpop.f32.mrb[0].mxu0
      %v684 = vpop.f32.mrb[0].mxu0
      %v685 = vadd.f32 %v528, %v684
      %v686 = vpop.f32.mrb[0].mxu0
      %687 = vmatprep.mubr.bf16.mxu0 0
      %688 = vmatmul.mubr.bf16.gmra.mrb[0].mxu0 %v597
      %v689 = vpop.f32.mrb[0].mxu0
      %v690 = vadd.f32 %v528, %v689
      %v691 = vpop.f32.mrb[0].mxu0
      %v692 = vpop.f32.mrb[0].mxu0
      %v693 = vadd.f32 %v528, %v692
      %v694 = vpop.f32.mrb[0].mxu0
      %695 = vmatprep.mubr.bf16.mxu0 0
      %696 = vmatmul.mubr.bf16.gmra.mrb[0].mxu0 %v600
      %v697 = vpop.f32.mrb[0].mxu0
      %v698 = vadd.f32 %v528, %v697
      %v699 = vpop.f32.mrb[0].mxu0
      %v700 = vpop.f32.mrb[0].mxu0
      %v701 = vadd.f32 %v528, %v700
      %v702 = vpop.f32.mrb[0].mxu0
      %703 = vmatprep.mubr.bf16.mxu0 0
      %704 = vmatmul.mubr.bf16.gmra.mrb[0].mxu0 %v603
      %v705 = vpop.f32.mrb[0].mxu0
      %v706 = vadd.f32 %v528, %v705
      %v707 = vpop.f32.mrb[0].mxu0
      %v708 = vpop.f32.mrb[0].mxu0
      %v709 = vadd.f32 %v528, %v708
      %v710 = vpop.f32.mrb[0].mxu0
      %711 = vmatprep.mubr.bf16.mxu0 0
      %712 = vmatmul.mubr.bf16.gmra.mrb[0].mxu0 %v606
      %v713 = vpop.f32.mrb[0].mxu0
      %v714 = vadd.f32 %v528, %v713
      %v715 = vpop.f32.mrb[0].mxu0
      %v716 = vpop.f32.mrb[0].mxu0
      %v717 = vadd.f32 %v528, %v716
      %v718 = vpop.f32.mrb[0].mxu0
      %719 = vmatprep.mubr.bf16.mxu0 0
      %720 = vmatmul.mubr.bf16.gmra.mrb[0].mxu0 %v609
      %v721 = vpop.f32.mrb[0].mxu0
      %v722 = vadd.f32 %v528, %v721
      %v723 = vpop.f32.mrb[0].mxu0
      %v724 = vpop.f32.mrb[0].mxu0
      %v725 = vadd.f32 %v528, %v724
      %v726 = vpop.f32.mrb[0].mxu0
      %727 = vdwg.mxu0
      %v728 = vmax.f32 %v650, 0.0
      %v729 = vmax.f32 %v653, 0.0
      %v730 = vmax.f32 %v658, 0.0
      %v731 = vmax.f32 %v661, 0.0
      %v732 = vmax.f32 %v666, 0.0
      %v733 = vmax.f32 %v669, 0.0
      %v734 = vmax.f32 %v674, 0.0
      %v735 = vmax.f32 %v677, 0.0
      %v736 = vmax.f32 %v682, 0.0
      %v737 = vmax.f32 %v685, 0.0
      %v738 = vmax.f32 %v690, 0.0
      %v739 = vmax.f32 %v693, 0.0
      %v740 = vmax.f32 %v698, 0.0
      %v741 = vmax.f32 %v701, 0.0
      %v742 = vmax.f32 %v706, 0.0
      %v743 = vmax.f32 %v709, 0.0
      %v744 = vmax.f32 %v714, 0.0
      %v745 = vmax.f32 %v717, 0.0
      %v746 = vmax.f32 %v722, 0.0
      %v747 = vmax.f32 %v725, 0.0
      %vm768 = vcmask 1040384
      %v769 = vrot.slane %v728, 7
      %v770 = vrot.slane %v729, 7
      %v771 = vsel %vm768, %v769, %v770
      %v772 = vrot.slane %v730, 7
      %v773 = vrot.slane %v731, 7
      %v774 = vsel %vm768, %v772, %v773
      %v775 = vrot.slane %v732, 7
      %v776 = vrot.slane %v733, 7
      %v777 = vsel %vm768, %v775, %v776
      %v778 = vrot.slane %v734, 7
      %v779 = vrot.slane %v735, 7
      %v780 = vsel %vm768, %v778, %v779
      %v781 = vrot.slane %v736, 7
      %v782 = vrot.slane %v737, 7
      %v783 = vsel %vm768, %v781, %v782
      %v784 = vrot.slane %v738, 7
      %v785 = vrot.slane %v739, 7
      %v786 = vsel %vm768, %v784, %v785
      %v787 = vrot.slane %v740, 7
      %v788 = vrot.slane %v741, 7
      %v789 = vsel %vm768, %v787, %v788
      %v790 = vrot.slane %v742, 7
      %v791 = vrot.slane %v743, 7
      %v792 = vsel %vm768, %v790, %v791
      %v793 = vrot.slane %v744, 7
      %v794 = vrot.slane %v745, 7
      %v795 = vsel %vm768, %v793, %v794
      %v796 = vrot.slane %v746, 7
      %v797 = vrot.slane %v747, 7
      %v798 = vsel %vm768, %v796, %v797
      %v819 = vsel %vm768, 0.0, %v769
      %v820 = vsel %vm768, 0.0, %v772
      %v821 = vsel %vm768, 0.0, %v775
      %v822 = vsel %vm768, 0.0, %v778
      %v823 = vsel %vm768, 0.0, %v781
      %v824 = vsel %vm768, 0.0, %v784
      %v825 = vsel %vm768, 0.0, %v787
      %v826 = vsel %vm768, 0.0, %v790
      %v827 = vsel %vm768, 0.0, %v793
      %v828 = vsel %vm768, 0.0, %v796
      %vm829 = vcmask 1046528
      %v830 = vrot.slane %v728, 1
      %v831 = vrot.slane %v729, 1
      %v832 = vsel %vm829, %v830, %v831
      %v833 = vrot.slane %v730, 1
      %v834 = vrot.slane %v731, 1
      %v835 = vsel %vm829, %v833, %v834
      %v836 = vrot.slane %v732, 1
      %v837 = vrot.slane %v733, 1
      %v838 = vsel %vm829, %v836, %v837
      %v839 = vrot.slane %v734, 1
      %v840 = vrot.slane %v735, 1
      %v841 = vsel %vm829, %v839, %v840
      %v842 = vrot.slane %v736, 1
      %v843 = vrot.slane %v737, 1
      %v844 = vsel %vm829, %v842, %v843
      %v845 = vrot.slane %v738, 1
      %v846 = vrot.slane %v739, 1
      %v847 = vsel %vm829, %v845, %v846
      %v848 = vrot.slane %v740, 1
      %v849 = vrot.slane %v741, 1
      %v850 = vsel %vm829, %v848, %v849
      %v851 = vrot.slane %v742, 1
      %v852 = vrot.slane %v743, 1
      %v853 = vsel %vm829, %v851, %v852
      %v854 = vrot.slane %v744, 1
      %v855 = vrot.slane %v745, 1
      %v856 = vsel %vm829, %v854, %v855
      %v857 = vrot.slane %v746, 1
      %v858 = vrot.slane %v747, 1
      %v859 = vsel %vm829, %v857, %v858
      %v880 = vsel %vm829, %v831, 0.0
      %v881 = vsel %vm829, %v834, 0.0
      %v882 = vsel %vm829, %v837, 0.0
      %v883 = vsel %vm829, %v840, 0.0
      %v884 = vsel %vm829, %v843, 0.0
      %v885 = vsel %vm829, %v846, 0.0
      %v886 = vsel %vm829, %v849, 0.0
      %v887 = vsel %vm829, %v852, 0.0
      %v888 = vsel %vm829, %v855, 0.0
      %v889 = vsel %vm829, %v858, 0.0
      %v890 = vpack.c.bf16 %v771, %v819
      %v891 = vpack.c.bf16 %v729, %v728
      %v892 = vpack.c.bf16 %v880, %v832
      %v893 = vpack.c.bf16 %v774, %v820
      %v894 = vpack.c.bf16 %v731, %v730
      %v895 = vpack.c.bf16 %v881, %v835
      %v896 = vpack.c.bf16 %v777, %v821
      %v897 = vpack.c.bf16 %v733, %v732
      %v898 = vpack.c.bf16 %v882, %v838
      %v899 = vpack.c.bf16 %v780, %v822
      %v900 = vpack.c.bf16 %v735, %v734
      %v901 = vpack.c.bf16 %v883, %v841
      %v902 = vpack.c.bf16 %v783, %v823
      %v903 = vpack.c.bf16 %v737, %v736
      %v904 = vpack.c.bf16 %v884, %v844
      %v905 = vpack.c.bf16 %v786, %v824
      %v906 = vpack.c.bf16 %v739, %v738
      %v907 = vpack.c.bf16 %v885, %v847
      %v908 = vpack.c.bf16 %v789, %v825
      %v909 = vpack.c.bf16 %v741, %v740
      %v910 = vpack.c.bf16 %v886, %v850
      %v911 = vpack.c.bf16 %v792, %v826
      %v912 = vpack.c.bf16 %v743, %v742
      %v913 = vpack.c.bf16 %v887, %v853
      %v914 = vpack.c.bf16 %v795, %v827
      %v915 = vpack.c.bf16 %v745, %v744
      %v916 = vpack.c.bf16 %v888, %v856
      %v917 = vpack.c.bf16 %v798, %v828
      %v918 = vpack.c.bf16 %v747, %v746
      %v919 = vpack.c.bf16 %v889, %v859
      %920 = vst [vmem:[#allocation2] sm:$0xff] %v890
      %921 = vst [vmem:[#allocation2 + $0x8] sm:$0xff] %v891
      %922 = vst [vmem:[#allocation2 + $0x10] sm:$0xff] %v892
      %923 = vst [vmem:[#allocation2 + $0x18] sm:$0xff] %v893
      %924 = vst [vmem:[#allocation2 + $0x20] sm:$0xff] %v894
      %925 = vst [vmem:[#allocation2 + $0x28] sm:$0xff] %v895
      %926 = vst [vmem:[#allocation2 + $0x30] sm:$0xff] %v896
      %927 = vst [vmem:[#allocation2 + $0x38] sm:$0xff] %v897
      %928 = vst [vmem:[#allocation2 + $0x40] sm:$0xff] %v898
      %929 = vst [vmem:[#allocation2 + $0x48] sm:$0xff] %v899
      %930 = vst [vmem:[#allocation2 + $0x50] sm:$0xff] %v900
      %931 = vst [vmem:[#allocation2 + $0x58] sm:$0xff] %v901
      %932 = vst [vmem:[#allocation2 + $0x60] sm:$0xff] %v902
      %933 = vst [vmem:[#allocation2 + $0x68] sm:$0xff] %v903
      %934 = vst [vmem:[#allocation2 + $0x70] sm:$0xff] %v904
      %935 = vst [vmem:[#allocation2 + $0x78] sm:$0xff] %v905
      %936 = vst [vmem:[#allocation2 + $0x80] sm:$0xff] %v906
      %937 = vst [vmem:[#allocation2 + $0x88] sm:$0xff] %v907
      %938 = vst [vmem:[#allocation2 + $0x90] sm:$0xff] %v908
      %939 = vst [vmem:[#allocation2 + $0x98] sm:$0xff] %v909
      %940 = vst [vmem:[#allocation2 + $0xa0] sm:$0xff] %v910
      %941 = vst [vmem:[#allocation2 + $0xa8] sm:$0xff] %v911
      %942 = vst [vmem:[#allocation2 + $0xb0] sm:$0xff] %v912
      %943 = vst [vmem:[#allocation2 + $0xb8] sm:$0xff] %v913
      %944 = vst [vmem:[#allocation2 + $0xc0] sm:$0xff] %v914
      %945 = vst [vmem:[#allocation2 + $0xc8] sm:$0xff] %v915
      %946 = vst [vmem:[#allocation2 + $0xd0] sm:$0xff] %v916
      %947 = vst [vmem:[#allocation2 + $0xd8] sm:$0xff] %v917
      %948 = vst [vmem:[#allocation2 + $0xe0] sm:$0xff] %v918
      %949 = vst [vmem:[#allocation2 + $0xe8] sm:$0xff] %v919
      %p950 = scmp.eq.s32.totalorder %s25, 0
      // Predicated region
      $region57: #{conv_block_forward.1} parent=55 // pred_check
        %p951 = pneg %p950
      $region58: #{conv_block_forward.1} parent=55 // pred_check_branch
        %953 = sbr.rel (%p951) target = $region60
      $region59: #{conv_block_forward.1} parent=55 // pred_region
        %954 = vst [vmem:[#allocation2] sm:$0xff] 0
        %955 = vst [vmem:[#allocation2 + $0x8] sm:$0xff] 0
        %956 = vst [vmem:[#allocation2 + $0x10] sm:$0xff] 0
      $region60: #{conv_block_forward.1} parent=55 // pred_fallthru
        _
      %p957 = scmp.eq.s32.totalorder %s25, 1
      // Predicated region
      $region61: #{conv_block_forward.1} parent=55 // pred_check
        %p958 = pneg %p957
      $region62: #{conv_block_forward.1} parent=55 // pred_check_branch
        %960 = sbr.rel (%p958) target = $region64
      $region63: #{conv_block_forward.1} parent=55 // pred_region
        %s961 = scalar_lea.vmem [#allocation2], 216
        %962 = vst [vmem:[%s961] sm:$0xff] 0
        %963 = vst [vmem:[%s961 + $0x8] sm:$0xff] 0
        %964 = vst [vmem:[%s961 + $0x10] sm:$0xff] 0
      $region64: #{conv_block_forward.1} parent=55 // pred_fallthru
        _
      %v965 = vld [vmem:[#allocation2] sm:$0xff]
      %v966 = vld [vmem:[#allocation2 + $0x8] sm:$0xff]
      %v967 = vld [vmem:[#allocation2 + $0x10] sm:$0xff]
      %v968 = vld [vmem:[#allocation2 + $0x18] sm:$0xff]
      %v969 = vld [vmem:[#allocation2 + $0x20] sm:$0xff]
      %v970 = vld [vmem:[#allocation2 + $0x28] sm:$0xff]
      %v971 = vld [vmem:[#allocation2 + $0x30] sm:$0xff]
      %v972 = vld [vmem:[#allocation2 + $0x38] sm:$0xff]
      %v973 = vld [vmem:[#allocation2 + $0x40] sm:$0xff]
      %v974 = vld [vmem:[#allocation2 + $0x48] sm:$0xff]
      %v975 = vld [vmem:[#allocation2 + $0x50] sm:$0xff]
      %v976 = vld [vmem:[#allocation2 + $0x58] sm:$0xff]
      %v977 = vld [vmem:[#allocation2 + $0x60] sm:$0xff]
      %v978 = vld [vmem:[#allocation2 + $0x68] sm:$0xff]
      %v979 = vld [vmem:[#allocation2 + $0x70] sm:$0xff]
      %v980 = vld [vmem:[#allocation2 + $0x78] sm:$0xff]
      %v981 = vld [vmem:[#allocation2 + $0x80] sm:$0xff]
      %v982 = vld [vmem:[#allocation2 + $0x88] sm:$0xff]
      %v983 = vld [vmem:[#allocation2 + $0x90] sm:$0xff]
      %v984 = vld [vmem:[#allocation2 + $0x98] sm:$0xff]
      %v985 = vld [vmem:[#allocation2 + $0xa0] sm:$0xff]
      %v986 = vld [vmem:[#allocation2 + $0xa8] sm:$0xff]
      %v987 = vld [vmem:[#allocation2 + $0xb0] sm:$0xff]
      %v988 = vld [vmem:[#allocation2 + $0xb8] sm:$0xff]
      %v989 = vld [vmem:[%s5] sm:$0xf]
      %v990 = vld [vmem:[%s5 + $0x4] sm:$0xf]
      %v991 = vld [vmem:[%s5 + $0x8] sm:$0xf]
      %v992 = vld [vmem:[%s5 + $0xc] sm:$0xf]
      %v993 = vld [vmem:[%s5 + $0x10] sm:$0xf]
      %v994 = vld [vmem:[%s5 + $0x14] sm:$0xf]
      %v995 = vld [vmem:[%s5 + $0x18] sm:$0xf]
      %v996 = vld [vmem:[%s5 + $0x1c] sm:$0xf]
      %v997 = vld [vmem:[%s5 + $0x20] sm:$0xf]
      %v998 = vld [vmem:[%s5 + $0x24] sm:$0xf]
      %v999 = vld [vmem:[%s5 + $0x28] sm:$0xf]
      %v1000 = vld [vmem:[%s5 + $0x2c] sm:$0xf]
      %v1001 = vld [vmem:[%s5 + $0x30] sm:$0xf]
      %v1002 = vld [vmem:[%s5 + $0x34] sm:$0xf]
      %v1003 = vld [vmem:[%s5 + $0x38] sm:$0xf]
      %v1004 = vld [vmem:[%s5 + $0x3c] sm:$0xf]
      %v1005 = vld [vmem:[%s5 + $0x40] sm:$0xf]
      %v1006 = vld [vmem:[%s5 + $0x44] sm:$0xf]
      %v1007 = vld [vmem:[%s5 + $0x48] sm:$0xf]
      %v1008 = vld [vmem:[%s5 + $0x4c] sm:$0xf]
      %v1009 = vld [vmem:[%s5 + $0x50] sm:$0xf]
      %v1010 = vld [vmem:[%s5 + $0x54] sm:$0xf]
      %v1011 = vld [vmem:[%s5 + $0x58] sm:$0xf]
      %v1012 = vld [vmem:[%s5 + $0x5c] sm:$0xf]
      %v1013 = vld [vmem:[%s5 + $0x60] sm:$0xf]
      %v1014 = vld [vmem:[%s5 + $0x64] sm:$0xf]
      %v1015 = vld [vmem:[%s5 + $0x68] sm:$0xf]
      %v1016 = vld [vmem:[%s5 + $0x6c] sm:$0xf]
      %v1017 = vld [vmem:[%s5 + $0x70] sm:$0xf]
      %v1018 = vld [vmem:[%s5 + $0x74] sm:$0xf]
      %v1019 = vld [vmem:[%s5 + $0x78] sm:$0xf]
      %v1020 = vld [vmem:[%s5 + $0x7c] sm:$0xf]
      %v1021 = vld [vmem:[%s5 + $0x80] sm:$0xf]
      %v1022 = vld [vmem:[%s5 + $0x84] sm:$0xf]
      %v1023 = vld [vmem:[%s5 + $0x88] sm:$0xf]
      %v1024 = vld [vmem:[%s5 + $0x8c] sm:$0xf]
      %v1025 = vld [vmem:[%s5 + $0x90] sm:$0xf]
      %v1026 = vld [vmem:[%s5 + $0x94] sm:$0xf]
      %v1027 = vld [vmem:[%s5 + $0x98] sm:$0xf]
      %v1028 = vld [vmem:[%s5 + $0x9c] sm:$0xf]
      %v1029 = vld [vmem:[%s5 + $0xa0] sm:$0xf]
      %v1030 = vld [vmem:[%s5 + $0xa4] sm:$0xf]
      %v1031 = vld [vmem:[%s5 + $0xa8] sm:$0xf]
      %v1032 = vld [vmem:[%s5 + $0xac] sm:$0xf]
      %v1033 = vld [vmem:[%s5 + $0xb0] sm:$0xf]
      %v1034 = vld [vmem:[%s5 + $0xb4] sm:$0xf]
      %v1035 = vld [vmem:[%s5 + $0xb8] sm:$0xf]
      %v1036 = vld [vmem:[%s5 + $0xbc] sm:$0xf]
      %v1085 = vunpack.c.l.b16 %v989
      %v1086 = vunpack.c.l.b16 %v990
      %v1087 = vunpack.c.l.b16 %v991
      %v1088 = vunpack.c.l.b16 %v992
      %v1089 = vunpack.c.l.b16 %v993
      %v1090 = vunpack.c.l.b16 %v994
      %v1091 = vunpack.c.l.b16 %v995
      %v1092 = vunpack.c.l.b16 %v996
      %v1093 = vunpack.c.l.b16 %v997
      %v1094 = vunpack.c.l.b16 %v998
      %v1095 = vunpack.c.l.b16 %v999
      %v1096 = vunpack.c.l.b16 %v1000
      %v1097 = vunpack.c.l.b16 %v1001
      %v1098 = vunpack.c.l.b16 %v1002
      %v1099 = vunpack.c.l.b16 %v1003
      %v1100 = vunpack.c.l.b16 %v1004
      %v1101 = vunpack.c.l.b16 %v1005
      %v1102 = vunpack.c.l.b16 %v1006
      %v1103 = vunpack.c.l.b16 %v1007
      %v1104 = vunpack.c.l.b16 %v1008
      %v1105 = vunpack.c.l.b16 %v1009
      %v1106 = vunpack.c.l.b16 %v1010
      %v1107 = vunpack.c.l.b16 %v1011
      %v1108 = vunpack.c.l.b16 %v1012
      %v1109 = vunpack.c.l.b16 %v1013
      %v1110 = vunpack.c.l.b16 %v1014
      %v1111 = vunpack.c.l.b16 %v1015
      %v1112 = vunpack.c.l.b16 %v1016
      %v1113 = vunpack.c.l.b16 %v1017
      %v1114 = vunpack.c.l.b16 %v1018
      %v1115 = vunpack.c.l.b16 %v1019
      %v1116 = vunpack.c.l.b16 %v1020
      %v1117 = vunpack.c.l.b16 %v1021
      %v1118 = vunpack.c.l.b16 %v1022
      %v1119 = vunpack.c.l.b16 %v1023
      %v1120 = vunpack.c.l.b16 %v1024
      %v1121 = vunpack.c.l.b16 %v1025
      %v1122 = vunpack.c.l.b16 %v1026
      %v1123 = vunpack.c.l.b16 %v1027
      %v1124 = vunpack.c.l.b16 %v1028
      %v1125 = vunpack.c.l.b16 %v1029
      %v1126 = vunpack.c.l.b16 %v1030
      %v1127 = vunpack.c.l.b16 %v1031
      %v1128 = vunpack.c.l.b16 %v1032
      %v1129 = vunpack.c.l.b16 %v1033
      %v1130 = vunpack.c.l.b16 %v1034
      %v1131 = vunpack.c.l.b16 %v1035
      %v1132 = vunpack.c.l.b16 %v1036
      %v1133 = vpack.c.b16 %v1086, %v1085
      %v1134 = vpack.c.b16 %v1088, %v1087
      %v1135 = vpack.c.b16 %v1090, %v1089
      %v1136 = vpack.c.b16 %v1092, %v1091
      %v1137 = vpack.c.b16 %v1094, %v1093
      %v1138 = vpack.c.b16 %v1096, %v1095
      %v1139 = vpack.c.b16 %v1098, %v1097
      %v1140 = vpack.c.b16 %v1100, %v1099
      %v1141 = vpack.c.b16 %v1102, %v1101
      %v1142 = vpack.c.b16 %v1104, %v1103
      %v1143 = vpack.c.b16 %v1106, %v1105
      %v1144 = vpack.c.b16 %v1108, %v1107
      %v1145 = vpack.c.b16 %v1110, %v1109
      %v1146 = vpack.c.b16 %v1112, %v1111
      %v1147 = vpack.c.b16 %v1114, %v1113
      %v1148 = vpack.c.b16 %v1116, %v1115
      %v1149 = vpack.c.b16 %v1118, %v1117
      %v1150 = vpack.c.b16 %v1120, %v1119
      %v1151 = vpack.c.b16 %v1122, %v1121
      %v1152 = vpack.c.b16 %v1124, %v1123
      %v1153 = vpack.c.b16 %v1126, %v1125
      %v1154 = vpack.c.b16 %v1128, %v1127
      %v1155 = vpack.c.b16 %v1130, %v1129
      %v1156 = vpack.c.b16 %v1132, %v1131
      %1181 = vmatprep.subr.bf16.mxu0 0
      %1182 = vmatpush1.bf16.msra.mxu0 %v1133
      %1183 = vmatprep.subr.bf16.mxu0 0
      %1184 = vmatpush1.bf16.msra.mxu0 %v1134
      %1185 = vmatprep.subr.bf16.mxu0 0
      %1186 = vmatpush1.bf16.msra.mxu0 %v1135
      %1187 = vmatprep.subr.bf16.mxu0 0
      %1188 = vmatpush1.bf16.msra.mxu0 %v1136
      %1189 = vmatprep.subr.bf16.mxu0 0
      %1190 = vmatpush1.bf16.msra.mxu0 %v1137
      %1191 = vmatprep.subr.bf16.mxu0 0
      %1192 = vmatpush1.bf16.msra.mxu0 %v1138
      %1193 = vmatprep.subr.bf16.mxu0 0
      %1194 = vmatpush1.bf16.msra.mxu0 %v1139
      %1195 = vmatprep.subr.bf16.mxu0 0
      %1196 = vmatpush1.bf16.msra.mxu0 %v1140
      %1197 = vmatprep.subr.bf16.mxu0 0
      %1198 = vmatpush1.bf16.msra.mxu0 %v1141
      %1199 = vmatprep.subr.bf16.mxu0 0
      %1200 = vmatpush1.bf16.msra.mxu0 %v1142
      %1201 = vmatprep.subr.bf16.mxu0 0
      %1202 = vmatpush1.bf16.msra.mxu0 %v1143
      %1203 = vmatprep.subr.bf16.mxu0 0
      %1204 = vmatpush1.bf16.msra.mxu0 %v1144
      %1205 = vmatprep.subr.bf16.mxu0 0
      %1206 = vmatpush1.bf16.msra.mxu0 %v1145
      %1207 = vmatprep.subr.bf16.mxu0 0
      %1208 = vmatpush1.bf16.msra.mxu0 %v1146
      %1209 = vmatprep.subr.bf16.mxu0 0
      %1210 = vmatpush1.bf16.msra.mxu0 %v1147
      %1211 = vmatprep.subr.bf16.mxu0 0
      %1212 = vmatpush1.bf16.msra.mxu0 %v1148
      %1213 = vmatprep.mubr.bf16.mxu0 %v966
      %1214 = vmatmul.mubr.bf16.gmra.mrb[0].mxu0 %v965
      %v1215 = vpop.f32.mrb[0].mxu0
      %v1216 = vadd.f32 0.0, %v1215
      %v1217 = vpop.f32.mrb[0].mxu0
      %v1218 = vpop.f32.mrb[0].mxu0
      %v1219 = vadd.f32 0.0, %v1218
      %v1220 = vpop.f32.mrb[0].mxu0
      %1221 = vmatprep.mubr.bf16.mxu0 %v969
      %1222 = vmatmul.mubr.bf16.gmra.mrb[0].mxu0 %v968
      %v1223 = vpop.f32.mrb[0].mxu0
      %v1224 = vadd.f32 0.0, %v1223
      %v1225 = vpop.f32.mrb[0].mxu0
      %v1226 = vpop.f32.mrb[0].mxu0
      %v1227 = vadd.f32 0.0, %v1226
      %v1228 = vpop.f32.mrb[0].mxu0
      %1229 = vmatprep.mubr.bf16.mxu0 %v972
      %1230 = vmatmul.mubr.bf16.gmra.mrb[0].mxu0 %v971
      %v1231 = vpop.f32.mrb[0].mxu0
      %v1232 = vadd.f32 0.0, %v1231
      %v1233 = vpop.f32.mrb[0].mxu0
      %v1234 = vpop.f32.mrb[0].mxu0
      %v1235 = vadd.f32 0.0, %v1234
      %v1236 = vpop.f32.mrb[0].mxu0
      %1237 = vmatprep.mubr.bf16.mxu0 %v975
      %1238 = vmatmul.mubr.bf16.gmra.mrb[0].mxu0 %v974
      %v1239 = vpop.f32.mrb[0].mxu0
      %v1240 = vadd.f32 0.0, %v1239
      %v1241 = vpop.f32.mrb[0].mxu0
      %v1242 = vpop.f32.mrb[0].mxu0
      %v1243 = vadd.f32 0.0, %v1242
      %v1244 = vpop.f32.mrb[0].mxu0
      %1245 = vmatprep.mubr.bf16.mxu0 %v978
      %1246 = vmatmul.mubr.bf16.gmra.mrb[0].mxu0 %v977
      %v1247 = vpop.f32.mrb[0].mxu0
      %v1248 = vadd.f32 0.0, %v1247
      %v1249 = vpop.f32.mrb[0].mxu0
      %v1250 = vpop.f32.mrb[0].mxu0
      %v1251 = vadd.f32 0.0, %v1250
      %v1252 = vpop.f32.mrb[0].mxu0
      %1253 = vmatprep.mubr.bf16.mxu0 %v981
      %1254 = vmatmul.mubr.bf16.gmra.mrb[0].mxu0 %v980
      %v1255 = vpop.f32.mrb[0].mxu0
      %v1256 = vadd.f32 0.0, %v1255
      %v1257 = vpop.f32.mrb[0].mxu0
      %v1258 = vpop.f32.mrb[0].mxu0
      %v1259 = vadd.f32 0.0, %v1258
      %v1260 = vpop.f32.mrb[0].mxu0
      %1261 = vmatprep.mubr.bf16.mxu0 %v984
      %1262 = vmatmul.mubr.bf16.gmra.mrb[0].mxu0 %v983
      %v1263 = vpop.f32.mrb[0].mxu0
      %v1264 = vadd.f32 0.0, %v1263
      %v1265 = vpop.f32.mrb[0].mxu0
      %v1266 = vpop.f32.mrb[0].mxu0
      %v1267 = vadd.f32 0.0, %v1266
      %v1268 = vpop.f32.mrb[0].mxu0
      %1269 = vmatprep.mubr.bf16.mxu0 %v987
      %1270 = vmatmul.mubr.bf16.gmra.mrb[0].mxu0 %v986
      %v1271 = vpop.f32.mrb[0].mxu0
      %v1272 = vadd.f32 0.0, %v1271
      %v1273 = vpop.f32.mrb[0].mxu0
      %v1274 = vpop.f32.mrb[0].mxu0
      %v1275 = vadd.f32 0.0, %v1274
      %v1276 = vpop.f32.mrb[0].mxu0
      %1277 = vdwg.mxu0
      %1278 = vmatprep.subr.bf16.mxu0 0
      %1279 = vmatpush1.bf16.msra.mxu0 %v1149
      %1280 = vmatprep.subr.bf16.mxu0 0
      %1281 = vmatpush1.bf16.msra.mxu0 %v1150
      %1282 = vmatprep.subr.bf16.mxu0 0
      %1283 = vmatpush1.bf16.msra.mxu0 %v1151
      %1284 = vmatprep.subr.bf16.mxu0 0
      %1285 = vmatpush1.bf16.msra.mxu0 %v1152
      %1286 = vmatprep.subr.bf16.mxu0 0
      %1287 = vmatpush1.bf16.msra.mxu0 %v1153
      %1288 = vmatprep.subr.bf16.mxu0 0
      %1289 = vmatpush1.bf16.msra.mxu0 %v1154
      %1290 = vmatprep.subr.bf16.mxu0 0
      %1291 = vmatpush1.bf16.msra.mxu0 %v1155
      %1292 = vmatprep.subr.bf16.mxu0 0
      %1293 = vmatpush1.bf16.msra.mxu0 %v1156
      %1294 = vmatprep.subr.bf16.mxu0 0
      %1295 = vmatpush1.bf16.msra.mxu0 0
      %1296 = vmatprep.subr.bf16.mxu0 0
      %1297 = vmatpush1.bf16.msra.mxu0 0
      %1298 = vmatprep.subr.bf16.mxu0 0
      %1299 = vmatpush1.bf16.msra.mxu0 0
      %1300 = vmatprep.subr.bf16.mxu0 0
      %1301 = vmatpush1.bf16.msra.mxu0 0
      %1302 = vmatprep.subr.bf16.mxu0 0
      %1303 = vmatpush1.bf16.msra.mxu0 0
      %1304 = vmatprep.subr.bf16.mxu0 0
      %1305 = vmatpush1.bf16.msra.mxu0 0
      %1306 = vmatprep.subr.bf16.mxu0 0
      %1307 = vmatpush1.bf16.msra.mxu0 0
      %1308 = vmatprep.subr.bf16.mxu0 0
      %1309 = vmatpush1.bf16.msra.mxu0 0
      %1310 = vmatprep.mubr.bf16.mxu0 0
      %1311 = vmatmul.mubr.bf16.gmra.mrb[0].mxu0 %v967
      %v1312 = vpop.f32.mrb[0].mxu0
      %v1313 = vadd.f32 %v1216, %v1312
      %v1314 = vpop.f32.mrb[0].mxu0
      %v1315 = vpop.f32.mrb[0].mxu0
      %v1316 = vadd.f32 %v1219, %v1315
      %v1317 = vpop.f32.mrb[0].mxu0
      %1318 = vmatprep.mubr.bf16.mxu0 0
      %1319 = vmatmul.mubr.bf16.gmra.mrb[0].mxu0 %v970
      %v1320 = vpop.f32.mrb[0].mxu0
      %v1321 = vadd.f32 %v1224, %v1320
      %v1322 = vpop.f32.mrb[0].mxu0
      %v1323 = vpop.f32.mrb[0].mxu0
      %v1324 = vadd.f32 %v1227, %v1323
      %v1325 = vpop.f32.mrb[0].mxu0
      %1326 = vmatprep.mubr.bf16.mxu0 0
      %1327 = vmatmul.mubr.bf16.gmra.mrb[0].mxu0 %v973
      %v1328 = vpop.f32.mrb[0].mxu0
      %v1329 = vadd.f32 %v1232, %v1328
      %v1330 = vpop.f32.mrb[0].mxu0
      %v1331 = vpop.f32.mrb[0].mxu0
      %v1332 = vadd.f32 %v1235, %v1331
      %v1333 = vpop.f32.mrb[0].mxu0
      %1334 = vmatprep.mubr.bf16.mxu0 0
      %1335 = vmatmul.mubr.bf16.gmra.mrb[0].mxu0 %v976
      %v1336 = vpop.f32.mrb[0].mxu0
      %v1337 = vadd.f32 %v1240, %v1336
      %v1338 = vpop.f32.mrb[0].mxu0
      %v1339 = vpop.f32.mrb[0].mxu0
      %v1340 = vadd.f32 %v1243, %v1339
      %v1341 = vpop.f32.mrb[0].mxu0
      %1342 = vmatprep.mubr.bf16.mxu0 0
      %1343 = vmatmul.mubr.bf16.gmra.mrb[0].mxu0 %v979
      %v1344 = vpop.f32.mrb[0].mxu0
      %v1345 = vadd.f32 %v1248, %v1344
      %v1346 = vpop.f32.mrb[0].mxu0
      %v1347 = vpop.f32.mrb[0].mxu0
      %v1348 = vadd.f32 %v1251, %v1347
      %v1349 = vpop.f32.mrb[0].mxu0
      %1350 = vmatprep.mubr.bf16.mxu0 0
      %1351 = vmatmul.mubr.bf16.gmra.mrb[0].mxu0 %v982
      %v1352 = vpop.f32.mrb[0].mxu0
      %v1353 = vadd.f32 %v1256, %v1352
      %v1354 = vpop.f32.mrb[0].mxu0
      %v1355 = vpop.f32.mrb[0].mxu0
      %v1356 = vadd.f32 %v1259, %v1355
      %v1357 = vpop.f32.mrb[0].mxu0
      %1358 = vmatprep.mubr.bf16.mxu0 0
      %1359 = vmatmul.mubr.bf16.gmra.mrb[0].mxu0 %v985
      %v1360 = vpop.f32.mrb[0].mxu0
      %v1361 = vadd.f32 %v1264, %v1360
      %v1362 = vpop.f32.mrb[0].mxu0
      %v1363 = vpop.f32.mrb[0].mxu0
      %v1364 = vadd.f32 %v1267, %v1363
      %v1365 = vpop.f32.mrb[0].mxu0
      %1366 = vmatprep.mubr.bf16.mxu0 0
      %1367 = vmatmul.mubr.bf16.gmra.mrb[0].mxu0 %v988
      %v1368 = vpop.f32.mrb[0].mxu0
      %v1369 = vadd.f32 %v1272, %v1368
      %v1370 = vpop.f32.mrb[0].mxu0
      %v1371 = vpop.f32.mrb[0].mxu0
      %v1372 = vadd.f32 %v1275, %v1371
      %v1373 = vpop.f32.mrb[0].mxu0
      %1374 = vdwg.mxu0
      %1375 = vst [vmem:[#allocation3] sm:$0xff] %v1313
      %1376 = vst [vmem:[#allocation3 + $0x8] sm:$0xff] %v1316
      %1377 = vst [vmem:[#allocation3 + $0x10] sm:$0xff] %v1321
      %1378 = vst [vmem:[#allocation3 + $0x18] sm:$0xff] %v1324
      %1379 = vst [vmem:[#allocation3 + $0x20] sm:$0xff] %v1329
      %1380 = vst [vmem:[#allocation3 + $0x28] sm:$0xff] %v1332
      %1381 = vst [vmem:[#allocation3 + $0x30] sm:$0xff] %v1337
      %1382 = vst [vmem:[#allocation3 + $0x38] sm:$0xff] %v1340
      %1383 = vst [vmem:[#allocation3 + $0x40] sm:$0xff] %v1345
      %1384 = vst [vmem:[#allocation3 + $0x48] sm:$0xff] %v1348
      %1385 = vst [vmem:[#allocation3 + $0x50] sm:$0xff] %v1353
      %1386 = vst [vmem:[#allocation3 + $0x58] sm:$0xff] %v1356
      %1387 = vst [vmem:[#allocation3 + $0x60] sm:$0xff] %v1361
      %1388 = vst [vmem:[#allocation3 + $0x68] sm:$0xff] %v1364
      %1389 = vst [vmem:[#allocation3 + $0x70] sm:$0xff] %v1369
      %1390 = vst [vmem:[#allocation3 + $0x78] sm:$0xff] %v1372
      %s1391 = scalar_lea.vmem [#allocation2], 24
      %v1392 = vld [vmem:[%s1391] sm:$0xff]
      %v1393 = vld [vmem:[%s1391 + $0x8] sm:$0xff]
      %v1394 = vld [vmem:[%s1391 + $0x10] sm:$0xff]
      %v1395 = vld [vmem:[%s1391 + $0x18] sm:$0xff]
      %v1396 = vld [vmem:[%s1391 + $0x20] sm:$0xff]
      %v1397 = vld [vmem:[%s1391 + $0x28] sm:$0xff]
      %v1398 = vld [vmem:[%s1391 + $0x30] sm:$0xff]
      %v1399 = vld [vmem:[%s1391 + $0x38] sm:$0xff]
      %v1400 = vld [vmem:[%s1391 + $0x40] sm:$0xff]
      %v1401 = vld [vmem:[%s1391 + $0x48] sm:$0xff]
      %v1402 = vld [vmem:[%s1391 + $0x50] sm:$0xff]
      %v1403 = vld [vmem:[%s1391 + $0x58] sm:$0xff]
      %v1404 = vld [vmem:[%s1391 + $0x60] sm:$0xff]
      %v1405 = vld [vmem:[%s1391 + $0x68] sm:$0xff]
      %v1406 = vld [vmem:[%s1391 + $0x70] sm:$0xff]
      %v1407 = vld [vmem:[%s1391 + $0x78] sm:$0xff]
      %v1408 = vld [vmem:[%s1391 + $0x80] sm:$0xff]
      %v1409 = vld [vmem:[%s1391 + $0x88] sm:$0xff]
      %v1410 = vld [vmem:[%s1391 + $0x90] sm:$0xff]
      %v1411 = vld [vmem:[%s1391 + $0x98] sm:$0xff]
      %v1412 = vld [vmem:[%s1391 + $0xa0] sm:$0xff]
      %v1413 = vld [vmem:[%s1391 + $0xa8] sm:$0xff]
      %v1414 = vld [vmem:[%s1391 + $0xb0] sm:$0xff]
      %v1415 = vld [vmem:[%s1391 + $0xb8] sm:$0xff]
      %s1416 = scalar_lea.vmem %s5, 192
      %v1417 = vld [vmem:[%s1416] sm:$0xf]
      %v1418 = vld [vmem:[%s1416 + $0x4] sm:$0xf]
      %v1419 = vld [vmem:[%s1416 + $0x8] sm:$0xf]
      %v1420 = vld [vmem:[%s1416 + $0xc] sm:$0xf]
      %v1421 = vld [vmem:[%s1416 + $0x10] sm:$0xf]
      %v1422 = vld [vmem:[%s1416 + $0x14] sm:$0xf]
      %v1423 = vld [vmem:[%s1416 + $0x18] sm:$0xf]
      %v1424 = vld [vmem:[%s1416 + $0x1c] sm:$0xf]
      %v1425 = vld [vmem:[%s1416 + $0x20] sm:$0xf]
      %v1426 = vld [vmem:[%s1416 + $0x24] sm:$0xf]
      %v1427 = vld [vmem:[%s1416 + $0x28] sm:$0xf]
      %v1428 = vld [vmem:[%s1416 + $0x2c] sm:$0xf]
      %v1429 = vld [vmem:[%s1416 + $0x30] sm:$0xf]
      %v1430 = vld [vmem:[%s1416 + $0x34] sm:$0xf]
      %v1431 = vld [vmem:[%s1416 + $0x38] sm:$0xf]
      %v1432 = vld [vmem:[%s1416 + $0x3c] sm:$0xf]
      %v1433 = vld [vmem:[%s1416 + $0x40] sm:$0xf]
      %v1434 = vld [vmem:[%s1416 + $0x44] sm:$0xf]
      %v1435 = vld [vmem:[%s1416 + $0x48] sm:$0xf]
      %v1436 = vld [vmem:[%s1416 + $0x4c] sm:$0xf]
      %v1437 = vld [vmem:[%s1416 + $0x50] sm:$0xf]
      %v1438 = vld [vmem:[%s1416 + $0x54] sm:$0xf]
      %v1439 = vld [vmem:[%s1416 + $0x58] sm:$0xf]
      %v1440 = vld [vmem:[%s1416 + $0x5c] sm:$0xf]
      %v1441 = vld [vmem:[%s1416 + $0x60] sm:$0xf]
      %v1442 = vld [vmem:[%s1416 + $0x64] sm:$0xf]
      %v1443 = vld [vmem:[%s1416 + $0x68] sm:$0xf]
      %v1444 = vld [vmem:[%s1416 + $0x6c] sm:$0xf]
      %v1445 = vld [vmem:[%s1416 + $0x70] sm:$0xf]
      %v1446 = vld [vmem:[%s1416 + $0x74] sm:$0xf]
      %v1447 = vld [vmem:[%s1416 + $0x78] sm:$0xf]
      %v1448 = vld [vmem:[%s1416 + $0x7c] sm:$0xf]
      %v1449 = vld [vmem:[%s1416 + $0x80] sm:$0xf]
      %v1450 = vld [vmem:[%s1416 + $0x84] sm:$0xf]
      %v1451 = vld [vmem:[%s1416 + $0x88] sm:$0xf]
      %v1452 = vld [vmem:[%s1416 + $0x8c] sm:$0xf]
      %v1453 = vld [vmem:[%s1416 + $0x90] sm:$0xf]
      %v1454 = vld [vmem:[%s1416 + $0x94] sm:$0xf]
      %v1455 = vld [vmem:[%s1416 + $0x98] sm:$0xf]
      %v1456 = vld [vmem:[%s1416 + $0x9c] sm:$0xf]
      %v1457 = vld [vmem:[%s1416 + $0xa0] sm:$0xf]
      %v1458 = vld [vmem:[%s1416 + $0xa4] sm:$0xf]
      %v1459 = vld [vmem:[%s1416 + $0xa8] sm:$0xf]
      %v1460 = vld [vmem:[%s1416 + $0xac] sm:$0xf]
      %v1461 = vld [vmem:[%s1416 + $0xb0] sm:$0xf]
      %v1462 = vld [vmem:[%s1416 + $0xb4] sm:$0xf]
      %v1463 = vld [vmem:[%s1416 + $0xb8] sm:$0xf]
      %v1464 = vld [vmem:[%s1416 + $0xbc] sm:$0xf]
      %v1513 = vunpack.c.l.b16 %v1417
      %v1514 = vunpack.c.l.b16 %v1418
      %v1515 = vunpack.c.l.b16 %v1419
      %v1516 = vunpack.c.l.b16 %v1420
      %v1517 = vunpack.c.l.b16 %v1421
      %v1518 = vunpack.c.l.b16 %v1422
      %v1519 = vunpack.c.l.b16 %v1423
      %v1520 = vunpack.c.l.b16 %v1424
      %v1521 = vunpack.c.l.b16 %v1425
      %v1522 = vunpack.c.l.b16 %v1426
      %v1523 = vunpack.c.l.b16 %v1427
      %v1524 = vunpack.c.l.b16 %v1428
      %v1525 = vunpack.c.l.b16 %v1429
      %v1526 = vunpack.c.l.b16 %v1430
      %v1527 = vunpack.c.l.b16 %v1431
      %v1528 = vunpack.c.l.b16 %v1432
      %v1529 = vunpack.c.l.b16 %v1433
      %v1530 = vunpack.c.l.b16 %v1434
      %v1531 = vunpack.c.l.b16 %v1435
      %v1532 = vunpack.c.l.b16 %v1436
      %v1533 = vunpack.c.l.b16 %v1437
      %v1534 = vunpack.c.l.b16 %v1438
      %v1535 = vunpack.c.l.b16 %v1439
      %v1536 = vunpack.c.l.b16 %v1440
      %v1537 = vunpack.c.l.b16 %v1441
      %v1538 = vunpack.c.l.b16 %v1442
      %v1539 = vunpack.c.l.b16 %v1443
      %v1540 = vunpack.c.l.b16 %v1444
      %v1541 = vunpack.c.l.b16 %v1445
      %v1542 = vunpack.c.l.b16 %v1446
      %v1543 = vunpack.c.l.b16 %v1447
      %v1544 = vunpack.c.l.b16 %v1448
      %v1545 = vunpack.c.l.b16 %v1449
      %v1546 = vunpack.c.l.b16 %v1450
      %v1547 = vunpack.c.l.b16 %v1451
      %v1548 = vunpack.c.l.b16 %v1452
      %v1549 = vunpack.c.l.b16 %v1453
      %v1550 = vunpack.c.l.b16 %v1454
      %v1551 = vunpack.c.l.b16 %v1455
      %v1552 = vunpack.c.l.b16 %v1456
      %v1553 = vunpack.c.l.b16 %v1457
      %v1554 = vunpack.c.l.b16 %v1458
      %v1555 = vunpack.c.l.b16 %v1459
      %v1556 = vunpack.c.l.b16 %v1460
      %v1557 = vunpack.c.l.b16 %v1461
      %v1558 = vunpack.c.l.b16 %v1462
      %v1559 = vunpack.c.l.b16 %v1463
      %v1560 = vunpack.c.l.b16 %v1464
      %v1561 = vpack.c.b16 %v1514, %v1513
      %v1562 = vpack.c.b16 %v1516, %v1515
      %v1563 = vpack.c.b16 %v1518, %v1517
      %v1564 = vpack.c.b16 %v1520, %v1519
      %v1565 = vpack.c.b16 %v1522, %v1521
      %v1566 = vpack.c.b16 %v1524, %v1523
      %v1567 = vpack.c.b16 %v1526, %v1525
      %v1568 = vpack.c.b16 %v1528, %v1527
      %v1569 = vpack.c.b16 %v1530, %v1529
      %v1570 = vpack.c.b16 %v1532, %v1531
      %v1571 = vpack.c.b16 %v1534, %v1533
      %v1572 = vpack.c.b16 %v1536, %v1535
      %v1573 = vpack.c.b16 %v1538, %v1537
      %v1574 = vpack.c.b16 %v1540, %v1539
      %v1575 = vpack.c.b16 %v1542, %v1541
      %v1576 = vpack.c.b16 %v1544, %v1543
      %v1577 = vpack.c.b16 %v1546, %v1545
      %v1578 = vpack.c.b16 %v1548, %v1547
      %v1579 = vpack.c.b16 %v1550, %v1549
      %v1580 = vpack.c.b16 %v1552, %v1551
      %v1581 = vpack.c.b16 %v1554, %v1553
      %v1582 = vpack.c.b16 %v1556, %v1555
      %v1583 = vpack.c.b16 %v1558, %v1557
      %v1584 = vpack.c.b16 %v1560, %v1559
      %1609 = vmatprep.subr.bf16.mxu0 0
      %1610 = vmatpush1.bf16.msra.mxu0 %v1561
      %1611 = vmatprep.subr.bf16.mxu0 0
      %1612 = vmatpush1.bf16.msra.mxu0 %v1562
      %1613 = vmatprep.subr.bf16.mxu0 0
      %1614 = vmatpush1.bf16.msra.mxu0 %v1563
      %1615 = vmatprep.subr.bf16.mxu0 0
      %1616 = vmatpush1.bf16.msra.mxu0 %v1564
      %1617 = vmatprep.subr.bf16.mxu0 0
      %1618 = vmatpush1.bf16.msra.mxu0 %v1565
      %1619 = vmatprep.subr.bf16.mxu0 0
      %1620 = vmatpush1.bf16.msra.mxu0 %v1566
      %1621 = vmatprep.subr.bf16.mxu0 0
      %1622 = vmatpush1.bf16.msra.mxu0 %v1567
      %1623 = vmatprep.subr.bf16.mxu0 0
      %1624 = vmatpush1.bf16.msra.mxu0 %v1568
      %1625 = vmatprep.subr.bf16.mxu0 0
      %1626 = vmatpush1.bf16.msra.mxu0 %v1569
      %1627 = vmatprep.subr.bf16.mxu0 0
      %1628 = vmatpush1.bf16.msra.mxu0 %v1570
      %1629 = vmatprep.subr.bf16.mxu0 0
      %1630 = vmatpush1.bf16.msra.mxu0 %v1571
      %1631 = vmatprep.subr.bf16.mxu0 0
      %1632 = vmatpush1.bf16.msra.mxu0 %v1572
      %1633 = vmatprep.subr.bf16.mxu0 0
      %1634 = vmatpush1.bf16.msra.mxu0 %v1573
      %1635 = vmatprep.subr.bf16.mxu0 0
      %1636 = vmatpush1.bf16.msra.mxu0 %v1574
      %1637 = vmatprep.subr.bf16.mxu0 0
      %1638 = vmatpush1.bf16.msra.mxu0 %v1575
      %1639 = vmatprep.subr.bf16.mxu0 0
      %1640 = vmatpush1.bf16.msra.mxu0 %v1576
      %1641 = vmatprep.mubr.bf16.mxu0 %v1393
      %1642 = vmatmul.mubr.bf16.gmra.mrb[0].mxu0 %v1392
      %v1643 = vpop.f32.mrb[0].mxu0
      %v1644 = vadd.f32 0.0, %v1643
      %v1645 = vpop.f32.mrb[0].mxu0
      %v1646 = vpop.f32.mrb[0].mxu0
      %v1647 = vadd.f32 0.0, %v1646
      %v1648 = vpop.f32.mrb[0].mxu0
      %1649 = vmatprep.mubr.bf16.mxu0 %v1396
      %1650 = vmatmul.mubr.bf16.gmra.mrb[0].mxu0 %v1395
      %v1651 = vpop.f32.mrb[0].mxu0
      %v1652 = vadd.f32 0.0, %v1651
      %v1653 = vpop.f32.mrb[0].mxu0
      %v1654 = vpop.f32.mrb[0].mxu0
      %v1655 = vadd.f32 0.0, %v1654
      %v1656 = vpop.f32.mrb[0].mxu0
      %1657 = vmatprep.mubr.bf16.mxu0 %v1399
      %1658 = vmatmul.mubr.bf16.gmra.mrb[0].mxu0 %v1398
      %v1659 = vpop.f32.mrb[0].mxu0
      %v1660 = vadd.f32 0.0, %v1659
      %v1661 = vpop.f32.mrb[0].mxu0
      %v1662 = vpop.f32.mrb[0].mxu0
      %v1663 = vadd.f32 0.0, %v1662
      %v1664 = vpop.f32.mrb[0].mxu0
      %1665 = vmatprep.mubr.bf16.mxu0 %v1402
      %1666 = vmatmul.mubr.bf16.gmra.mrb[0].mxu0 %v1401
      %v1667 = vpop.f32.mrb[0].mxu0
      %v1668 = vadd.f32 0.0, %v1667
      %v1669 = vpop.f32.mrb[0].mxu0
      %v1670 = vpop.f32.mrb[0].mxu0
      %v1671 = vadd.f32 0.0, %v1670
      %v1672 = vpop.f32.mrb[0].mxu0
      %1673 = vmatprep.mubr.bf16.mxu0 %v1405
      %1674 = vmatmul.mubr.bf16.gmra.mrb[0].mxu0 %v1404
      %v1675 = vpop.f32.mrb[0].mxu0
      %v1676 = vadd.f32 0.0, %v1675
      %v1677 = vpop.f32.mrb[0].mxu0
      %v1678 = vpop.f32.mrb[0].mxu0
      %v1679 = vadd.f32 0.0, %v1678
      %v1680 = vpop.f32.mrb[0].mxu0
      %1681 = vmatprep.mubr.bf16.mxu0 %v1408
      %1682 = vmatmul.mubr.bf16.gmra.mrb[0].mxu0 %v1407
      %v1683 = vpop.f32.mrb[0].mxu0
      %v1684 = vadd.f32 0.0, %v1683
      %v1685 = vpop.f32.mrb[0].mxu0
      %v1686 = vpop.f32.mrb[0].mxu0
      %v1687 = vadd.f32 0.0, %v1686
      %v1688 = vpop.f32.mrb[0].mxu0
      %1689 = vmatprep.mubr.bf16.mxu0 %v1411
      %1690 = vmatmul.mubr.bf16.gmra.mrb[0].mxu0 %v1410
      %v1691 = vpop.f32.mrb[0].mxu0
      %v1692 = vadd.f32 0.0, %v1691
      %v1693 = vpop.f32.mrb[0].mxu0
      %v1694 = vpop.f32.mrb[0].mxu0
      %v1695 = vadd.f32 0.0, %v1694
      %v1696 = vpop.f32.mrb[0].mxu0
      %1697 = vmatprep.mubr.bf16.mxu0 %v1414
      %1698 = vmatmul.mubr.bf16.gmra.mrb[0].mxu0 %v1413
      %v1699 = vpop.f32.mrb[0].mxu0
      %v1700 = vadd.f32 0.0, %v1699
      %v1701 = vpop.f32.mrb[0].mxu0
      %v1702 = vpop.f32.mrb[0].mxu0
      %v1703 = vadd.f32 0.0, %v1702
      %v1704 = vpop.f32.mrb[0].mxu0
      %1705 = vdwg.mxu0
      %1706 = vmatprep.subr.bf16.mxu0 0
      %1707 = vmatpush1.bf16.msra.mxu0 %v1577
      %1708 = vmatprep.subr.bf16.mxu0 0
      %1709 = vmatpush1.bf16.msra.mxu0 %v1578
      %1710 = vmatprep.subr.bf16.mxu0 0
      %1711 = vmatpush1.bf16.msra.mxu0 %v1579
      %1712 = vmatprep.subr.bf16.mxu0 0
      %1713 = vmatpush1.bf16.msra.mxu0 %v1580
      %1714 = vmatprep.subr.bf16.mxu0 0
      %1715 = vmatpush1.bf16.msra.mxu0 %v1581
      %1716 = vmatprep.subr.bf16.mxu0 0
      %1717 = vmatpush1.bf16.msra.mxu0 %v1582
      %1718 = vmatprep.subr.bf16.mxu0 0
      %1719 = vmatpush1.bf16.msra.mxu0 %v1583
      %1720 = vmatprep.subr.bf16.mxu0 0
      %1721 = vmatpush1.bf16.msra.mxu0 %v1584
      %1722 = vmatprep.subr.bf16.mxu0 0
      %1723 = vmatpush1.bf16.msra.mxu0 0
      %1724 = vmatprep.subr.bf16.mxu0 0
      %1725 = vmatpush1.bf16.msra.mxu0 0
      %1726 = vmatprep.subr.bf16.mxu0 0
      %1727 = vmatpush1.bf16.msra.mxu0 0
      %1728 = vmatprep.subr.bf16.mxu0 0
      %1729 = vmatpush1.bf16.msra.mxu0 0
      %1730 = vmatprep.subr.bf16.mxu0 0
      %1731 = vmatpush1.bf16.msra.mxu0 0
      %1732 = vmatprep.subr.bf16.mxu0 0
      %1733 = vmatpush1.bf16.msra.mxu0 0
      %1734 = vmatprep.subr.bf16.mxu0 0
      %1735 = vmatpush1.bf16.msra.mxu0 0
      %1736 = vmatprep.subr.bf16.mxu0 0
      %1737 = vmatpush1.bf16.msra.mxu0 0
      %1738 = vmatprep.mubr.bf16.mxu0 0
      %1739 = vmatmul.mubr.bf16.gmra.mrb[0].mxu0 %v1394
      %v1740 = vpop.f32.mrb[0].mxu0
      %v1741 = vadd.f32 %v1644, %v1740
      %v1742 = vpop.f32.mrb[0].mxu0
      %v1743 = vpop.f32.mrb[0].mxu0
      %v1744 = vadd.f32 %v1647, %v1743
      %v1745 = vpop.f32.mrb[0].mxu0
      %1746 = vmatprep.mubr.bf16.mxu0 0
      %1747 = vmatmul.mubr.bf16.gmra.mrb[0].mxu0 %v1397
      %v1748 = vpop.f32.mrb[0].mxu0
      %v1749 = vadd.f32 %v1652, %v1748
      %v1750 = vpop.f32.mrb[0].mxu0
      %v1751 = vpop.f32.mrb[0].mxu0
      %v1752 = vadd.f32 %v1655, %v1751
      %v1753 = vpop.f32.mrb[0].mxu0
      %1754 = vmatprep.mubr.bf16.mxu0 0
      %1755 = vmatmul.mubr.bf16.gmra.mrb[0].mxu0 %v1400
      %v1756 = vpop.f32.mrb[0].mxu0
      %v1757 = vadd.f32 %v1660, %v1756
      %v1758 = vpop.f32.mrb[0].mxu0
      %v1759 = vpop.f32.mrb[0].mxu0
      %v1760 = vadd.f32 %v1663, %v1759
      %v1761 = vpop.f32.mrb[0].mxu0
      %1762 = vmatprep.mubr.bf16.mxu0 0
      %1763 = vmatmul.mubr.bf16.gmra.mrb[0].mxu0 %v1403
      %v1764 = vpop.f32.mrb[0].mxu0
      %v1765 = vadd.f32 %v1668, %v1764
      %v1766 = vpop.f32.mrb[0].mxu0
      %v1767 = vpop.f32.mrb[0].mxu0
      %v1768 = vadd.f32 %v1671, %v1767
      %v1769 = vpop.f32.mrb[0].mxu0
      %1770 = vmatprep.mubr.bf16.mxu0 0
      %1771 = vmatmul.mubr.bf16.gmra.mrb[0].mxu0 %v1406
      %v1772 = vpop.f32.mrb[0].mxu0
      %v1773 = vadd.f32 %v1676, %v1772
      %v1774 = vpop.f32.mrb[0].mxu0
      %v1775 = vpop.f32.mrb[0].mxu0
      %v1776 = vadd.f32 %v1679, %v1775
      %v1777 = vpop.f32.mrb[0].mxu0
      %1778 = vmatprep.mubr.bf16.mxu0 0
      %1779 = vmatmul.mubr.bf16.gmra.mrb[0].mxu0 %v1409
      %v1780 = vpop.f32.mrb[0].mxu0
      %v1781 = vadd.f32 %v1684, %v1780
      %v1782 = vpop.f32.mrb[0].mxu0
      %v1783 = vpop.f32.mrb[0].mxu0
      %v1784 = vadd.f32 %v1687, %v1783
      %v1785 = vpop.f32.mrb[0].mxu0
      %1786 = vmatprep.mubr.bf16.mxu0 0
      %1787 = vmatmul.mubr.bf16.gmra.mrb[0].mxu0 %v1412
      %v1788 = vpop.f32.mrb[0].mxu0
      %v1789 = vadd.f32 %v1692, %v1788
      %v1790 = vpop.f32.mrb[0].mxu0
      %v1791 = vpop.f32.mrb[0].mxu0
      %v1792 = vadd.f32 %v1695, %v1791
      %v1793 = vpop.f32.mrb[0].mxu0
      %1794 = vmatprep.mubr.bf16.mxu0 0
      %1795 = vmatmul.mubr.bf16.gmra.mrb[0].mxu0 %v1415
      %v1796 = vpop.f32.mrb[0].mxu0
      %v1797 = vadd.f32 %v1700, %v1796
      %v1798 = vpop.f32.mrb[0].mxu0
      %v1799 = vpop.f32.mrb[0].mxu0
      %v1800 = vadd.f32 %v1703, %v1799
      %v1801 = vpop.f32.mrb[0].mxu0
      %1802 = vdwg.mxu0
      %v1803 = vld [vmem:[#allocation3] sm:$0xff]
      %v1804 = vld [vmem:[#allocation3 + $0x8] sm:$0xff]
      %v1805 = vld [vmem:[#allocation3 + $0x10] sm:$0xff]
      %v1806 = vld [vmem:[#allocation3 + $0x18] sm:$0xff]
      %v1807 = vld [vmem:[#allocation3 + $0x20] sm:$0xff]
      %v1808 = vld [vmem:[#allocation3 + $0x28] sm:$0xff]
      %v1809 = vld [vmem:[#allocation3 + $0x30] sm:$0xff]
      %v1810 = vld [vmem:[#allocation3 + $0x38] sm:$0xff]
      %v1811 = vld [vmem:[#allocation3 + $0x40] sm:$0xff]
      %v1812 = vld [vmem:[#allocation3 + $0x48] sm:$0xff]
      %v1813 = vld [vmem:[#allocation3 + $0x50] sm:$0xff]
      %v1814 = vld [vmem:[#allocation3 + $0x58] sm:$0xff]
      %v1815 = vld [vmem:[#allocation3 + $0x60] sm:$0xff]
      %v1816 = vld [vmem:[#allocation3 + $0x68] sm:$0xff]
      %v1817 = vld [vmem:[#allocation3 + $0x70] sm:$0xff]
      %v1818 = vld [vmem:[#allocation3 + $0x78] sm:$0xff]
      %v1819 = vadd.f32 %v1803, %v1741
      %v1820 = vadd.f32 %v1804, %v1744
      %v1821 = vadd.f32 %v1805, %v1749
      %v1822 = vadd.f32 %v1806, %v1752
      %v1823 = vadd.f32 %v1807, %v1757
      %v1824 = vadd.f32 %v1808, %v1760
      %v1825 = vadd.f32 %v1809, %v1765
      %v1826 = vadd.f32 %v1810, %v1768
      %v1827 = vadd.f32 %v1811, %v1773
      %v1828 = vadd.f32 %v1812, %v1776
      %v1829 = vadd.f32 %v1813, %v1781
      %v1830 = vadd.f32 %v1814, %v1784
      %v1831 = vadd.f32 %v1815, %v1789
      %v1832 = vadd.f32 %v1816, %v1792
      %v1833 = vadd.f32 %v1817, %v1797
      %v1834 = vadd.f32 %v1818, %v1800
      %1835 = vst [vmem:[#allocation3] sm:$0xff] %v1819
      %1836 = vst [vmem:[#allocation3 + $0x8] sm:$0xff] %v1820
      %1837 = vst [vmem:[#allocation3 + $0x10] sm:$0xff] %v1821
      %1838 = vst [vmem:[#allocation3 + $0x18] sm:$0xff] %v1822
      %1839 = vst [vmem:[#allocation3 + $0x20] sm:$0xff] %v1823
      %1840 = vst [vmem:[#allocation3 + $0x28] sm:$0xff] %v1824
      %1841 = vst [vmem:[#allocation3 + $0x30] sm:$0xff] %v1825
      %1842 = vst [vmem:[#allocation3 + $0x38] sm:$0xff] %v1826
      %1843 = vst [vmem:[#allocation3 + $0x40] sm:$0xff] %v1827
      %1844 = vst [vmem:[#allocation3 + $0x48] sm:$0xff] %v1828
      %1845 = vst [vmem:[#allocation3 + $0x50] sm:$0xff] %v1829
      %1846 = vst [vmem:[#allocation3 + $0x58] sm:$0xff] %v1830
      %1847 = vst [vmem:[#allocation3 + $0x60] sm:$0xff] %v1831
      %1848 = vst [vmem:[#allocation3 + $0x68] sm:$0xff] %v1832
      %1849 = vst [vmem:[#allocation3 + $0x70] sm:$0xff] %v1833
      %1850 = vst [vmem:[#allocation3 + $0x78] sm:$0xff] %v1834
      %s1851 = scalar_lea.vmem [#allocation2], 48
      %v1852 = vld [vmem:[%s1851] sm:$0xff]
      %v1853 = vld [vmem:[%s1851 + $0x8] sm:$0xff]
      %v1854 = vld [vmem:[%s1851 + $0x10] sm:$0xff]
      %v1855 = vld [vmem:[%s1851 + $0x18] sm:$0xff]
      %v1856 = vld [vmem:[%s1851 + $0x20] sm:$0xff]
      %v1857 = vld [vmem:[%s1851 + $0x28] sm:$0xff]
      %v1858 = vld [vmem:[%s1851 + $0x30] sm:$0xff]
      %v1859 = vld [vmem:[%s1851 + $0x38] sm:$0xff]
      %v1860 = vld [vmem:[%s1851 + $0x40] sm:$0xff]
      %v1861 = vld [vmem:[%s1851 + $0x48] sm:$0xff]
      %v1862 = vld [vmem:[%s1851 + $0x50] sm:$0xff]
      %v1863 = vld [vmem:[%s1851 + $0x58] sm:$0xff]
      %v1864 = vld [vmem:[%s1851 + $0x60] sm:$0xff]
      %v1865 = vld [vmem:[%s1851 + $0x68] sm:$0xff]
      %v1866 = vld [vmem:[%s1851 + $0x70] sm:$0xff]
      %v1867 = vld [vmem:[%s1851 + $0x78] sm:$0xff]
      %v1868 = vld [vmem:[%s1851 + $0x80] sm:$0xff]
      %v1869 = vld [vmem:[%s1851 + $0x88] sm:$0xff]
      %v1870 = vld [vmem:[%s1851 + $0x90] sm:$0xff]
      %v1871 = vld [vmem:[%s1851 + $0x98] sm:$0xff]
      %v1872 = vld [vmem:[%s1851 + $0xa0] sm:$0xff]
      %v1873 = vld [vmem:[%s1851 + $0xa8] sm:$0xff]
      %v1874 = vld [vmem:[%s1851 + $0xb0] sm:$0xff]
      %v1875 = vld [vmem:[%s1851 + $0xb8] sm:$0xff]
      %s1876 = scalar_lea.vmem %s5, 384
      %v1877 = vld [vmem:[%s1876] sm:$0xf]
      %v1878 = vld [vmem:[%s1876 + $0x4] sm:$0xf]
      %v1879 = vld [vmem:[%s1876 + $0x8] sm:$0xf]
      %v1880 = vld [vmem:[%s1876 + $0xc] sm:$0xf]
      %v1881 = vld [vmem:[%s1876 + $0x10] sm:$0xf]
      %v1882 = vld [vmem:[%s1876 + $0x14] sm:$0xf]
      %v1883 = vld [vmem:[%s1876 + $0x18] sm:$0xf]
      %v1884 = vld [vmem:[%s1876 + $0x1c] sm:$0xf]
      %v1885 = vld [vmem:[%s1876 + $0x20] sm:$0xf]
      %v1886 = vld [vmem:[%s1876 + $0x24] sm:$0xf]
      %v1887 = vld [vmem:[%s1876 + $0x28] sm:$0xf]
      %v1888 = vld [vmem:[%s1876 + $0x2c] sm:$0xf]
      %v1889 = vld [vmem:[%s1876 + $0x30] sm:$0xf]
      %v1890 = vld [vmem:[%s1876 + $0x34] sm:$0xf]
      %v1891 = vld [vmem:[%s1876 + $0x38] sm:$0xf]
      %v1892 = vld [vmem:[%s1876 + $0x3c] sm:$0xf]
      %v1893 = vld [vmem:[%s1876 + $0x40] sm:$0xf]
      %v1894 = vld [vmem:[%s1876 + $0x44] sm:$0xf]
      %v1895 = vld [vmem:[%s1876 + $0x48] sm:$0xf]
      %v1896 = vld [vmem:[%s1876 + $0x4c] sm:$0xf]
      %v1897 = vld [vmem:[%s1876 + $0x50] sm:$0xf]
      %v1898 = vld [vmem:[%s1876 + $0x54] sm:$0xf]
      %v1899 = vld [vmem:[%s1876 + $0x58] sm:$0xf]
      %v1900 = vld [vmem:[%s1876 + $0x5c] sm:$0xf]
      %v1901 = vld [vmem:[%s1876 + $0x60] sm:$0xf]
      %v1902 = vld [vmem:[%s1876 + $0x64] sm:$0xf]
      %v1903 = vld [vmem:[%s1876 + $0x68] sm:$0xf]
      %v1904 = vld [vmem:[%s1876 + $0x6c] sm:$0xf]
      %v1905 = vld [vmem:[%s1876 + $0x70] sm:$0xf]
      %v1906 = vld [vmem:[%s1876 + $0x74] sm:$0xf]
      %v1907 = vld [vmem:[%s1876 + $0x78] sm:$0xf]
      %v1908 = vld [vmem:[%s1876 + $0x7c] sm:$0xf]
      %v1909 = vld [vmem:[%s1876 + $0x80] sm:$0xf]
      %v1910 = vld [vmem:[%s1876 + $0x84] sm:$0xf]
      %v1911 = vld [vmem:[%s1876 + $0x88] sm:$0xf]
      %v1912 = vld [vmem:[%s1876 + $0x8c] sm:$0xf]
      %v1913 = vld [vmem:[%s1876 + $0x90] sm:$0xf]
      %v1914 = vld [vmem:[%s1876 + $0x94] sm:$0xf]
      %v1915 = vld [vmem:[%s1876 + $0x98] sm:$0xf]
      %v1916 = vld [vmem:[%s1876 + $0x9c] sm:$0xf]
      %v1917 = vld [vmem:[%s1876 + $0xa0] sm:$0xf]
      %v1918 = vld [vmem:[%s1876 + $0xa4] sm:$0xf]
      %v1919 = vld [vmem:[%s1876 + $0xa8] sm:$0xf]
      %v1920 = vld [vmem:[%s1876 + $0xac] sm:$0xf]
      %v1921 = vld [vmem:[%s1876 + $0xb0] sm:$0xf]
      %v1922 = vld [vmem:[%s1876 + $0xb4] sm:$0xf]
      %v1923 = vld [vmem:[%s1876 + $0xb8] sm:$0xf]
      %v1924 = vld [vmem:[%s1876 + $0xbc] sm:$0xf]
      %v1973 = vunpack.c.l.b16 %v1877
      %v1974 = vunpack.c.l.b16 %v1878
      %v1975 = vunpack.c.l.b16 %v1879
      %v1976 = vunpack.c.l.b16 %v1880
      %v1977 = vunpack.c.l.b16 %v1881
      %v1978 = vunpack.c.l.b16 %v1882
      %v1979 = vunpack.c.l.b16 %v1883
      %v1980 = vunpack.c.l.b16 %v1884
      %v1981 = vunpack.c.l.b16 %v1885
      %v1982 = vunpack.c.l.b16 %v1886
      %v1983 = vunpack.c.l.b16 %v1887
      %v1984 = vunpack.c.l.b16 %v1888
      %v1985 = vunpack.c.l.b16 %v1889
      %v1986 = vunpack.c.l.b16 %v1890
      %v1987 = vunpack.c.l.b16 %v1891
      %v1988 = vunpack.c.l.b16 %v1892
      %v1989 = vunpack.c.l.b16 %v1893
      %v1990 = vunpack.c.l.b16 %v1894
      %v1991 = vunpack.c.l.b16 %v1895
      %v1992 = vunpack.c.l.b16 %v1896
      %v1993 = vunpack.c.l.b16 %v1897
      %v1994 = vunpack.c.l.b16 %v1898
      %v1995 = vunpack.c.l.b16 %v1899
      %v1996 = vunpack.c.l.b16 %v1900
      %v1997 = vunpack.c.l.b16 %v1901
      %v1998 = vunpack.c.l.b16 %v1902
      %v1999 = vunpack.c.l.b16 %v1903
      %v2000 = vunpack.c.l.b16 %v1904
      %v2001 = vunpack.c.l.b16 %v1905
      %v2002 = vunpack.c.l.b16 %v1906
      %v2003 = vunpack.c.l.b16 %v1907
      %v2004 = vunpack.c.l.b16 %v1908
      %v2005 = vunpack.c.l.b16 %v1909
      %v2006 = vunpack.c.l.b16 %v1910
      %v2007 = vunpack.c.l.b16 %v1911
      %v2008 = vunpack.c.l.b16 %v1912
      %v2009 = vunpack.c.l.b16 %v1913
      %v2010 = vunpack.c.l.b16 %v1914
      %v2011 = vunpack.c.l.b16 %v1915
      %v2012 = vunpack.c.l.b16 %v1916
      %v2013 = vunpack.c.l.b16 %v1917
      %v2014 = vunpack.c.l.b16 %v1918
      %v2015 = vunpack.c.l.b16 %v1919
      %v2016 = vunpack.c.l.b16 %v1920
      %v2017 = vunpack.c.l.b16 %v1921
      %v2018 = vunpack.c.l.b16 %v1922
      %v2019 = vunpack.c.l.b16 %v1923
      %v2020 = vunpack.c.l.b16 %v1924
      %v2021 = vpack.c.b16 %v1974, %v1973
      %v2022 = vpack.c.b16 %v1976, %v1975
      %v2023 = vpack.c.b16 %v1978, %v1977
      %v2024 = vpack.c.b16 %v1980, %v1979
      %v2025 = vpack.c.b16 %v1982, %v1981
      %v2026 = vpack.c.b16 %v1984, %v1983
      %v2027 = vpack.c.b16 %v1986, %v1985
      %v2028 = vpack.c.b16 %v1988, %v1987
      %v2029 = vpack.c.b16 %v1990, %v1989
      %v2030 = vpack.c.b16 %v1992, %v1991
      %v2031 = vpack.c.b16 %v1994, %v1993
      %v2032 = vpack.c.b16 %v1996, %v1995
      %v2033 = vpack.c.b16 %v1998, %v1997
      %v2034 = vpack.c.b16 %v2000, %v1999
      %v2035 = vpack.c.b16 %v2002, %v2001
      %v2036 = vpack.c.b16 %v2004, %v2003
      %v2037 = vpack.c.b16 %v2006, %v2005
      %v2038 = vpack.c.b16 %v2008, %v2007
      %v2039 = vpack.c.b16 %v2010, %v2009
      %v2040 = vpack.c.b16 %v2012, %v2011
      %v2041 = vpack.c.b16 %v2014, %v2013
      %v2042 = vpack.c.b16 %v2016, %v2015
      %v2043 = vpack.c.b16 %v2018, %v2017
      %v2044 = vpack.c.b16 %v2020, %v2019
      %2069 = vmatprep.subr.bf16.mxu0 0
      %2070 = vmatpush1.bf16.msra.mxu0 %v2021
      %2071 = vmatprep.subr.bf16.mxu0 0
      %2072 = vmatpush1.bf16.msra.mxu0 %v2022
      %2073 = vmatprep.subr.bf16.mxu0 0
      %2074 = vmatpush1.bf16.msra.mxu0 %v2023
      %2075 = vmatprep.subr.bf16.mxu0 0
      %2076 = vmatpush1.bf16.msra.mxu0 %v2024
      %2077 = vmatprep.subr.bf16.mxu0 0
      %2078 = vmatpush1.bf16.msra.mxu0 %v2025
      %2079 = vmatprep.subr.bf16.mxu0 0
      %2080 = vmatpush1.bf16.msra.mxu0 %v2026
      %2081 = vmatprep.subr.bf16.mxu0 0
      %2082 = vmatpush1.bf16.msra.mxu0 %v2027
      %2083 = vmatprep.subr.bf16.mxu0 0
      %2084 = vmatpush1.bf16.msra.mxu0 %v2028
      %2085 = vmatprep.subr.bf16.mxu0 0
      %2086 = vmatpush1.bf16.msra.mxu0 %v2029
      %2087 = vmatprep.subr.bf16.mxu0 0
      %2088 = vmatpush1.bf16.msra.mxu0 %v2030
      %2089 = vmatprep.subr.bf16.mxu0 0
      %2090 = vmatpush1.bf16.msra.mxu0 %v2031
      %2091 = vmatprep.subr.bf16.mxu0 0
      %2092 = vmatpush1.bf16.msra.mxu0 %v2032
      %2093 = vmatprep.subr.bf16.mxu0 0
      %2094 = vmatpush1.bf16.msra.mxu0 %v2033
      %2095 = vmatprep.subr.bf16.mxu0 0
      %2096 = vmatpush1.bf16.msra.mxu0 %v2034
      %2097 = vmatprep.subr.bf16.mxu0 0
      %2098 = vmatpush1.bf16.msra.mxu0 %v2035
      %2099 = vmatprep.subr.bf16.mxu0 0
      %2100 = vmatpush1.bf16.msra.mxu0 %v2036
      %2101 = vmatprep.mubr.bf16.mxu0 %v1853
      %2102 = vmatmul.mubr.bf16.gmra.mrb[0].mxu0 %v1852
      %v2103 = vpop.f32.mrb[0].mxu0
      %v2104 = vadd.f32 0.0, %v2103
      %v2105 = vpop.f32.mrb[0].mxu0
      %v2106 = vpop.f32.mrb[0].mxu0
      %v2107 = vadd.f32 0.0, %v2106
      %v2108 = vpop.f32.mrb[0].mxu0
      %2109 = vmatprep.mubr.bf16.mxu0 %v1856
      %2110 = vmatmul.mubr.bf16.gmra.mrb[0].mxu0 %v1855
      %v2111 = vpop.f32.mrb[0].mxu0
      %v2112 = vadd.f32 0.0, %v2111
      %v2113 = vpop.f32.mrb[0].mxu0
      %v2114 = vpop.f32.mrb[0].mxu0
      %v2115 = vadd.f32 0.0, %v2114
      %v2116 = vpop.f32.mrb[0].mxu0
      %2117 = vmatprep.mubr.bf16.mxu0 %v1859
      %2118 = vmatmul.mubr.bf16.gmra.mrb[0].mxu0 %v1858
      %v2119 = vpop.f32.mrb[0].mxu0
      %v2120 = vadd.f32 0.0, %v2119
      %v2121 = vpop.f32.mrb[0].mxu0
      %v2122 = vpop.f32.mrb[0].mxu0
      %v2123 = vadd.f32 0.0, %v2122
      %v2124 = vpop.f32.mrb[0].mxu0
      %2125 = vmatprep.mubr.bf16.mxu0 %v1862
      %2126 = vmatmul.mubr.bf16.gmra.mrb[0].mxu0 %v1861
      %v2127 = vpop.f32.mrb[0].mxu0
      %v2128 = vadd.f32 0.0, %v2127
      %v2129 = vpop.f32.mrb[0].mxu0
      %v2130 = vpop.f32.mrb[0].mxu0
      %v2131 = vadd.f32 0.0, %v2130
      %v2132 = vpop.f32.mrb[0].mxu0
      %2133 = vmatprep.mubr.bf16.mxu0 %v1865
      %2134 = vmatmul.mubr.bf16.gmra.mrb[0].mxu0 %v1864
      %v2135 = vpop.f32.mrb[0].mxu0
      %v2136 = vadd.f32 0.0, %v2135
      %v2137 = vpop.f32.mrb[0].mxu0
      %v2138 = vpop.f32.mrb[0].mxu0
      %v2139 = vadd.f32 0.0, %v2138
      %v2140 = vpop.f32.mrb[0].mxu0
      %2141 = vmatprep.mubr.bf16.mxu0 %v1868
      %2142 = vmatmul.mubr.bf16.gmra.mrb[0].mxu0 %v1867
      %v2143 = vpop.f32.mrb[0].mxu0
      %v2144 = vadd.f32 0.0, %v2143
      %v2145 = vpop.f32.mrb[0].mxu0
      %v2146 = vpop.f32.mrb[0].mxu0
      %v2147 = vadd.f32 0.0, %v2146
      %v2148 = vpop.f32.mrb[0].mxu0
      %2149 = vmatprep.mubr.bf16.mxu0 %v1871
      %2150 = vmatmul.mubr.bf16.gmra.mrb[0].mxu0 %v1870
      %v2151 = vpop.f32.mrb[0].mxu0
      %v2152 = vadd.f32 0.0, %v2151
      %v2153 = vpop.f32.mrb[0].mxu0
      %v2154 = vpop.f32.mrb[0].mxu0
      %v2155 = vadd.f32 0.0, %v2154
      %v2156 = vpop.f32.mrb[0].mxu0
      %2157 = vmatprep.mubr.bf16.mxu0 %v1874
      %2158 = vmatmul.mubr.bf16.gmra.mrb[0].mxu0 %v1873
      %v2159 = vpop.f32.mrb[0].mxu0
      %v2160 = vadd.f32 0.0, %v2159
      %v2161 = vpop.f32.mrb[0].mxu0
      %v2162 = vpop.f32.mrb[0].mxu0
      %v2163 = vadd.f32 0.0, %v2162
      %v2164 = vpop.f32.mrb[0].mxu0
      %2165 = vdwg.mxu0
      %2166 = vmatprep.subr.bf16.mxu0 0
      %2167 = vmatpush1.bf16.msra.mxu0 %v2037
      %2168 = vmatprep.subr.bf16.mxu0 0
      %2169 = vmatpush1.bf16.msra.mxu0 %v2038
      %2170 = vmatprep.subr.bf16.mxu0 0
      %2171 = vmatpush1.bf16.msra.mxu0 %v2039
      %2172 = vmatprep.subr.bf16.mxu0 0
      %2173 = vmatpush1.bf16.msra.mxu0 %v2040
      %2174 = vmatprep.subr.bf16.mxu0 0
      %2175 = vmatpush1.bf16.msra.mxu0 %v2041
      %2176 = vmatprep.subr.bf16.mxu0 0
      %2177 = vmatpush1.bf16.msra.mxu0 %v2042
      %2178 = vmatprep.subr.bf16.mxu0 0
      %2179 = vmatpush1.bf16.msra.mxu0 %v2043
      %2180 = vmatprep.subr.bf16.mxu0 0
      %2181 = vmatpush1.bf16.msra.mxu0 %v2044
      %2182 = vmatprep.subr.bf16.mxu0 0
      %2183 = vmatpush1.bf16.msra.mxu0 0
      %2184 = vmatprep.subr.bf16.mxu0 0
      %2185 = vmatpush1.bf16.msra.mxu0 0
      %2186 = vmatprep.subr.bf16.mxu0 0
      %2187 = vmatpush1.bf16.msra.mxu0 0
      %2188 = vmatprep.subr.bf16.mxu0 0
      %2189 = vmatpush1.bf16.msra.mxu0 0
      %2190 = vmatprep.subr.bf16.mxu0 0
      %2191 = vmatpush1.bf16.msra.mxu0 0
      %2192 = vmatprep.subr.bf16.mxu0 0
      %2193 = vmatpush1.bf16.msra.mxu0 0
      %2194 = vmatprep.subr.bf16.mxu0 0
      %2195 = vmatpush1.bf16.msra.mxu0 0
      %2196 = vmatprep.subr.bf16.mxu0 0
      %2197 = vmatpush1.bf16.msra.mxu0 0
      %2198 = vmatprep.mubr.bf16.mxu0 0
      %2199 = vmatmul.mubr.bf16.gmra.mrb[0].mxu0 %v1854
      %v2200 = vpop.f32.mrb[0].mxu0
      %v2201 = vadd.f32 %v2104, %v2200
      %v2202 = vpop.f32.mrb[0].mxu0
      %v2203 = vpop.f32.mrb[0].mxu0
      %v2204 = vadd.f32 %v2107, %v2203
      %v2205 = vpop.f32.mrb[0].mxu0
      %2206 = vmatprep.mubr.bf16.mxu0 0
      %2207 = vmatmul.mubr.bf16.gmra.mrb[0].mxu0 %v1857
      %v2208 = vpop.f32.mrb[0].mxu0
      %v2209 = vadd.f32 %v2112, %v2208
      %v2210 = vpop.f32.mrb[0].mxu0
      %v2211 = vpop.f32.mrb[0].mxu0
      %v2212 = vadd.f32 %v2115, %v2211
      %v2213 = vpop.f32.mrb[0].mxu0
      %2214 = vmatprep.mubr.bf16.mxu0 0
      %2215 = vmatmul.mubr.bf16.gmra.mrb[0].mxu0 %v1860
      %v2216 = vpop.f32.mrb[0].mxu0
      %v2217 = vadd.f32 %v2120, %v2216
      %v2218 = vpop.f32.mrb[0].mxu0
      %v2219 = vpop.f32.mrb[0].mxu0
      %v2220 = vadd.f32 %v2123, %v2219
      %v2221 = vpop.f32.mrb[0].mxu0
      %2222 = vmatprep.mubr.bf16.mxu0 0
      %2223 = vmatmul.mubr.bf16.gmra.mrb[0].mxu0 %v1863
      %v2224 = vpop.f32.mrb[0].mxu0
      %v2225 = vadd.f32 %v2128, %v2224
      %v2226 = vpop.f32.mrb[0].mxu0
      %v2227 = vpop.f32.mrb[0].mxu0
      %v2228 = vadd.f32 %v2131, %v2227
      %v2229 = vpop.f32.mrb[0].mxu0
      %2230 = vmatprep.mubr.bf16.mxu0 0
      %2231 = vmatmul.mubr.bf16.gmra.mrb[0].mxu0 %v1866
      %v2232 = vpop.f32.mrb[0].mxu0
      %v2233 = vadd.f32 %v2136, %v2232
      %v2234 = vpop.f32.mrb[0].mxu0
      %v2235 = vpop.f32.mrb[0].mxu0
      %v2236 = vadd.f32 %v2139, %v2235
      %v2237 = vpop.f32.mrb[0].mxu0
      %2238 = vmatprep.mubr.bf16.mxu0 0
      %2239 = vmatmul.mubr.bf16.gmra.mrb[0].mxu0 %v1869
      %v2240 = vpop.f32.mrb[0].mxu0
      %v2241 = vadd.f32 %v2144, %v2240
      %v2242 = vpop.f32.mrb[0].mxu0
      %v2243 = vpop.f32.mrb[0].mxu0
      %v2244 = vadd.f32 %v2147, %v2243
      %v2245 = vpop.f32.mrb[0].mxu0
      %2246 = vmatprep.mubr.bf16.mxu0 0
      %2247 = vmatmul.mubr.bf16.gmra.mrb[0].mxu0 %v1872
      %v2248 = vpop.f32.mrb[0].mxu0
      %v2249 = vadd.f32 %v2152, %v2248
      %v2250 = vpop.f32.mrb[0].mxu0
      %v2251 = vpop.f32.mrb[0].mxu0
      %v2252 = vadd.f32 %v2155, %v2251
      %v2253 = vpop.f32.mrb[0].mxu0
      %2254 = vmatprep.mubr.bf16.mxu0 0
      %2255 = vmatmul.mubr.bf16.gmra.mrb[0].mxu0 %v1875
      %v2256 = vpop.f32.mrb[0].mxu0
      %v2257 = vadd.f32 %v2160, %v2256
      %v2258 = vpop.f32.mrb[0].mxu0
      %v2259 = vpop.f32.mrb[0].mxu0
      %v2260 = vadd.f32 %v2163, %v2259
      %v2261 = vpop.f32.mrb[0].mxu0
      %2262 = vdwg.mxu0
      %v2263 = vld [vmem:[#allocation3] sm:$0xff]
      %v2264 = vld [vmem:[#allocation3 + $0x8] sm:$0xff]
      %v2265 = vld [vmem:[#allocation3 + $0x10] sm:$0xff]
      %v2266 = vld [vmem:[#allocation3 + $0x18] sm:$0xff]
      %v2267 = vld [vmem:[#allocation3 + $0x20] sm:$0xff]
      %v2268 = vld [vmem:[#allocation3 + $0x28] sm:$0xff]
      %v2269 = vld [vmem:[#allocation3 + $0x30] sm:$0xff]
      %v2270 = vld [vmem:[#allocation3 + $0x38] sm:$0xff]
      %v2271 = vld [vmem:[#allocation3 + $0x40] sm:$0xff]
      %v2272 = vld [vmem:[#allocation3 + $0x48] sm:$0xff]
      %v2273 = vld [vmem:[#allocation3 + $0x50] sm:$0xff]
      %v2274 = vld [vmem:[#allocation3 + $0x58] sm:$0xff]
      %v2275 = vld [vmem:[#allocation3 + $0x60] sm:$0xff]
      %v2276 = vld [vmem:[#allocation3 + $0x68] sm:$0xff]
      %v2277 = vld [vmem:[#allocation3 + $0x70] sm:$0xff]
      %v2278 = vld [vmem:[#allocation3 + $0x78] sm:$0xff]
      %v2279 = vadd.f32 %v2263, %v2201
      %v2280 = vadd.f32 %v2264, %v2204
      %v2281 = vadd.f32 %v2265, %v2209
      %v2282 = vadd.f32 %v2266, %v2212
      %v2283 = vadd.f32 %v2267, %v2217
      %v2284 = vadd.f32 %v2268, %v2220
      %v2285 = vadd.f32 %v2269, %v2225
      %v2286 = vadd.f32 %v2270, %v2228
      %v2287 = vadd.f32 %v2271, %v2233
      %v2288 = vadd.f32 %v2272, %v2236
      %v2289 = vadd.f32 %v2273, %v2241
      %v2290 = vadd.f32 %v2274, %v2244
      %v2291 = vadd.f32 %v2275, %v2249
      %v2292 = vadd.f32 %v2276, %v2252
      %v2293 = vadd.f32 %v2277, %v2257
      %v2294 = vadd.f32 %v2278, %v2260
      %2295 = vst [vmem:[#allocation3] sm:$0xff] %v2279
      %2296 = vst [vmem:[#allocation3 + $0x8] sm:$0xff] %v2280
      %2297 = vst [vmem:[#allocation3 + $0x10] sm:$0xff] %v2281
      %2298 = vst [vmem:[#allocation3 + $0x18] sm:$0xff] %v2282
      %2299 = vst [vmem:[#allocation3 + $0x20] sm:$0xff] %v2283
      %2300 = vst [vmem:[#allocation3 + $0x28] sm:$0xff] %v2284
      %2301 = vst [vmem:[#allocation3 + $0x30] sm:$0xff] %v2285
      %2302 = vst [vmem:[#allocation3 + $0x38] sm:$0xff] %v2286
      %2303 = vst [vmem:[#allocation3 + $0x40] sm:$0xff] %v2287
      %2304 = vst [vmem:[#allocation3 + $0x48] sm:$0xff] %v2288
      %2305 = vst [vmem:[#allocation3 + $0x50] sm:$0xff] %v2289
      %2306 = vst [vmem:[#allocation3 + $0x58] sm:$0xff] %v2290
      %2307 = vst [vmem:[#allocation3 + $0x60] sm:$0xff] %v2291
      %2308 = vst [vmem:[#allocation3 + $0x68] sm:$0xff] %v2292
      %2309 = vst [vmem:[#allocation3 + $0x70] sm:$0xff] %v2293
      %2310 = vst [vmem:[#allocation3 + $0x78] sm:$0xff] %v2294
      %v2311 = vld [vmem:[#allocation3] sm:$0xff]
      %v2312 = vld [vmem:[#allocation3 + $0x8] sm:$0xff]
      %v2313 = vld [vmem:[#allocation3 + $0x10] sm:$0xff]
      %v2314 = vld [vmem:[#allocation3 + $0x18] sm:$0xff]
      %v2315 = vld [vmem:[#allocation3 + $0x20] sm:$0xff]
      %v2316 = vld [vmem:[#allocation3 + $0x28] sm:$0xff]
      %v2317 = vld [vmem:[#allocation3 + $0x30] sm:$0xff]
      %v2318 = vld [vmem:[#allocation3 + $0x38] sm:$0xff]
      %v2319 = vld [vmem:[#allocation3 + $0x40] sm:$0xff]
      %v2320 = vld [vmem:[#allocation3 + $0x48] sm:$0xff]
      %v2321 = vld [vmem:[#allocation3 + $0x50] sm:$0xff]
      %v2322 = vld [vmem:[#allocation3 + $0x58] sm:$0xff]
      %v2323 = vld [vmem:[#allocation3 + $0x60] sm:$0xff]
      %v2324 = vld [vmem:[#allocation3 + $0x68] sm:$0xff]
      %v2325 = vld [vmem:[#allocation3 + $0x70] sm:$0xff]
      %v2326 = vld [vmem:[#allocation3 + $0x78] sm:$0xff]
      %v2327 = vld [vmem:[%s6] sm:$0x1]
      %v2329 = vlaneseq
      %v2330 = vshrl.u32 %v2329, 7
      %v2331 = vsub.s32 0, %v2330
      %v2332 = vrot.slane %v2327, %v2331
      %v2334 = vadd.f32 %v2311, %v2332
      %v2335 = vadd.f32 %v2312, %v2332
      %v2336 = vadd.f32 %v2313, %v2332
      %v2337 = vadd.f32 %v2314, %v2332
      %v2338 = vadd.f32 %v2315, %v2332
      %v2339 = vadd.f32 %v2316, %v2332
      %v2340 = vadd.f32 %v2317, %v2332
      %v2341 = vadd.f32 %v2318, %v2332
      %v2342 = vadd.f32 %v2319, %v2332
      %v2343 = vadd.f32 %v2320, %v2332
      %v2344 = vadd.f32 %v2321, %v2332
      %v2345 = vadd.f32 %v2322, %v2332
      %v2346 = vadd.f32 %v2323, %v2332
      %v2347 = vadd.f32 %v2324, %v2332
      %v2348 = vadd.f32 %v2325, %v2332
      %v2349 = vadd.f32 %v2326, %v2332
      %v2350 = vmax.f32 %v2334, 0.0
      %v2351 = vmax.f32 %v2335, 0.0
      %v2352 = vmax.f32 %v2336, 0.0
      %v2353 = vmax.f32 %v2337, 0.0
      %v2354 = vmax.f32 %v2338, 0.0
      %v2355 = vmax.f32 %v2339, 0.0
      %v2356 = vmax.f32 %v2340, 0.0
      %v2357 = vmax.f32 %v2341, 0.0
      %v2358 = vmax.f32 %v2342, 0.0
      %v2359 = vmax.f32 %v2343, 0.0
      %v2360 = vmax.f32 %v2344, 0.0
      %v2361 = vmax.f32 %v2345, 0.0
      %v2362 = vmax.f32 %v2346, 0.0
      %v2363 = vmax.f32 %v2347, 0.0
      %v2364 = vmax.f32 %v2348, 0.0
      %v2365 = vmax.f32 %v2349, 0.0
      %v2366 = vpack.c.bf16 %v2351, %v2350
      %v2367 = vpack.c.bf16 %v2353, %v2352
      %v2368 = vpack.c.bf16 %v2355, %v2354
      %v2369 = vpack.c.bf16 %v2357, %v2356
      %v2370 = vpack.c.bf16 %v2359, %v2358
      %v2371 = vpack.c.bf16 %v2361, %v2360
      %v2372 = vpack.c.bf16 %v2363, %v2362
      %v2373 = vpack.c.bf16 %v2365, %v2364
      %v2374 = vld [vmem:[%s7] sm:$0xf]
      %v2375 = vld [vmem:[%s7 + $0x4] sm:$0xf]
      %v2376 = vld [vmem:[%s7 + $0x8] sm:$0xf]
      %v2377 = vld [vmem:[%s7 + $0xc] sm:$0xf]
      %v2378 = vld [vmem:[%s7 + $0x10] sm:$0xf]
      %v2379 = vld [vmem:[%s7 + $0x14] sm:$0xf]
      %v2380 = vld [vmem:[%s7 + $0x18] sm:$0xf]
      %v2381 = vld [vmem:[%s7 + $0x1c] sm:$0xf]
      %v2382 = vld [vmem:[%s7 + $0x20] sm:$0xf]
      %v2383 = vld [vmem:[%s7 + $0x24] sm:$0xf]
      %v2384 = vld [vmem:[%s7 + $0x28] sm:$0xf]
      %v2385 = vld [vmem:[%s7 + $0x2c] sm:$0xf]
      %v2386 = vld [vmem:[%s7 + $0x30] sm:$0xf]
      %v2387 = vld [vmem:[%s7 + $0x34] sm:$0xf]
      %v2388 = vld [vmem:[%s7 + $0x38] sm:$0xf]
      %v2389 = vld [vmem:[%s7 + $0x3c] sm:$0xf]
      %v2390 = vld [vmem:[%s8] sm:$0x1]
      %v2392 = vlaneseq
      %v2393 = vshrl.u32 %v2392, 7
      %v2394 = vsub.s32 0, %v2393
      %v2395 = vrot.slane %v2390, %v2394
      %v2413 = vunpack.c.l.b16 %v2374
      %v2414 = vunpack.c.l.b16 %v2375
      %v2415 = vunpack.c.l.b16 %v2376
      %v2416 = vunpack.c.l.b16 %v2377
      %v2417 = vunpack.c.l.b16 %v2378
      %v2418 = vunpack.c.l.b16 %v2379
      %v2419 = vunpack.c.l.b16 %v2380
      %v2420 = vunpack.c.l.b16 %v2381
      %v2421 = vunpack.c.l.b16 %v2382
      %v2422 = vunpack.c.l.b16 %v2383
      %v2423 = vunpack.c.l.b16 %v2384
      %v2424 = vunpack.c.l.b16 %v2385
      %v2425 = vunpack.c.l.b16 %v2386
      %v2426 = vunpack.c.l.b16 %v2387
      %v2427 = vunpack.c.l.b16 %v2388
      %v2428 = vunpack.c.l.b16 %v2389
      %v2429 = vpack.c.b16 %v2414, %v2413
      %v2430 = vpack.c.b16 %v2416, %v2415
      %v2431 = vpack.c.b16 %v2418, %v2417
      %v2432 = vpack.c.b16 %v2420, %v2419
      %v2433 = vpack.c.b16 %v2422, %v2421
      %v2434 = vpack.c.b16 %v2424, %v2423
      %v2435 = vpack.c.b16 %v2426, %v2425
      %v2436 = vpack.c.b16 %v2428, %v2427
      %2445 = vmatprep.subr.bf16.mxu0 0
      %2446 = vmatpush1.bf16.msra.mxu0 %v2429
      %2447 = vmatprep.subr.bf16.mxu0 0
      %2448 = vmatpush1.bf16.msra.mxu0 %v2430
      %2449 = vmatprep.subr.bf16.mxu0 0
      %2450 = vmatpush1.bf16.msra.mxu0 %v2431
      %2451 = vmatprep.subr.bf16.mxu0 0
      %2452 = vmatpush1.bf16.msra.mxu0 %v2432
      %2453 = vmatprep.subr.bf16.mxu0 0
      %2454 = vmatpush1.bf16.msra.mxu0 %v2433
      %2455 = vmatprep.subr.bf16.mxu0 0
      %2456 = vmatpush1.bf16.msra.mxu0 %v2434
      %2457 = vmatprep.subr.bf16.mxu0 0
      %2458 = vmatpush1.bf16.msra.mxu0 %v2435
      %2459 = vmatprep.subr.bf16.mxu0 0
      %2460 = vmatpush1.bf16.msra.mxu0 %v2436
      %2461 = vmatprep.subr.bf16.mxu0 0
      %2462 = vmatpush1.bf16.msra.mxu0 0
      %2463 = vmatprep.subr.bf16.mxu0 0
      %2464 = vmatpush1.bf16.msra.mxu0 0
      %2465 = vmatprep.subr.bf16.mxu0 0
      %2466 = vmatpush1.bf16.msra.mxu0 0
      %2467 = vmatprep.subr.bf16.mxu0 0
      %2468 = vmatpush1.bf16.msra.mxu0 0
      %2469 = vmatprep.subr.bf16.mxu0 0
      %2470 = vmatpush1.bf16.msra.mxu0 0
      %2471 = vmatprep.subr.bf16.mxu0 0
      %2472 = vmatpush1.bf16.msra.mxu0 0
      %2473 = vmatprep.subr.bf16.mxu0 0
      %2474 = vmatpush1.bf16.msra.mxu0 0
      %2475 = vmatprep.subr.bf16.mxu0 0
      %2476 = vmatpush1.bf16.msra.mxu0 0
      %2477 = vmatprep.mubr.bf16.mxu0 0
      %2478 = vmatmul.mubr.bf16.gmra.mrb[0].mxu0 %v2366
      %v2479 = vpop.f32.mrb[0].mxu0
      %v2480 = vadd.f32 %v2395, %v2479
      %v2481 = vpop.f32.mrb[0].mxu0
      %v2482 = vpop.f32.mrb[0].mxu0
      %v2483 = vadd.f32 %v2395, %v2482
      %v2484 = vpop.f32.mrb[0].mxu0
      %2485 = vmatprep.mubr.bf16.mxu0 0
      %2486 = vmatmul.mubr.bf16.gmra.mrb[0].mxu0 %v2367
      %v2487 = vpop.f32.mrb[0].mxu0
      %v2488 = vadd.f32 %v2395, %v2487
      %v2489 = vpop.f32.mrb[0].mxu0
      %v2490 = vpop.f32.mrb[0].mxu0
      %v2491 = vadd.f32 %v2395, %v2490
      %v2492 = vpop.f32.mrb[0].mxu0
      %2493 = vmatprep.mubr.bf16.mxu0 0
      %2494 = vmatmul.mubr.bf16.gmra.mrb[0].mxu0 %v2368
      %v2495 = vpop.f32.mrb[0].mxu0
      %v2496 = vadd.f32 %v2395, %v2495
      %v2497 = vpop.f32.mrb[0].mxu0
      %v2498 = vpop.f32.mrb[0].mxu0
      %v2499 = vadd.f32 %v2395, %v2498
      %v2500 = vpop.f32.mrb[0].mxu0
      %2501 = vmatprep.mubr.bf16.mxu0 0
      %2502 = vmatmul.mubr.bf16.gmra.mrb[0].mxu0 %v2369
      %v2503 = vpop.f32.mrb[0].mxu0
      %v2504 = vadd.f32 %v2395, %v2503
      %v2505 = vpop.f32.mrb[0].mxu0
      %v2506 = vpop.f32.mrb[0].mxu0
      %v2507 = vadd.f32 %v2395, %v2506
      %v2508 = vpop.f32.mrb[0].mxu0
      %2509 = vmatprep.mubr.bf16.mxu0 0
      %2510 = vmatmul.mubr.bf16.gmra.mrb[0].mxu0 %v2370
      %v2511 = vpop.f32.mrb[0].mxu0
      %v2512 = vadd.f32 %v2395, %v2511
      %v2513 = vpop.f32.mrb[0].mxu0
      %v2514 = vpop.f32.mrb[0].mxu0
      %v2515 = vadd.f32 %v2395, %v2514
      %v2516 = vpop.f32.mrb[0].mxu0
      %2517 = vmatprep.mubr.bf16.mxu0 0
      %2518 = vmatmul.mubr.bf16.gmra.mrb[0].mxu0 %v2371
      %v2519 = vpop.f32.mrb[0].mxu0
      %v2520 = vadd.f32 %v2395, %v2519
      %v2521 = vpop.f32.mrb[0].mxu0
      %v2522 = vpop.f32.mrb[0].mxu0
      %v2523 = vadd.f32 %v2395, %v2522
      %v2524 = vpop.f32.mrb[0].mxu0
      %2525 = vmatprep.mubr.bf16.mxu0 0
      %2526 = vmatmul.mubr.bf16.gmra.mrb[0].mxu0 %v2372
      %v2527 = vpop.f32.mrb[0].mxu0
      %v2528 = vadd.f32 %v2395, %v2527
      %v2529 = vpop.f32.mrb[0].mxu0
      %v2530 = vpop.f32.mrb[0].mxu0
      %v2531 = vadd.f32 %v2395, %v2530
      %v2532 = vpop.f32.mrb[0].mxu0
      %2533 = vmatprep.mubr.bf16.mxu0 0
      %2534 = vmatmul.mubr.bf16.gmra.mrb[0].mxu0 %v2373
      %v2535 = vpop.f32.mrb[0].mxu0
      %v2536 = vadd.f32 %v2395, %v2535
      %v2537 = vpop.f32.mrb[0].mxu0
      %v2538 = vpop.f32.mrb[0].mxu0
      %v2539 = vadd.f32 %v2395, %v2538
      %v2540 = vpop.f32.mrb[0].mxu0
      %2541 = vdwg.mxu0
      %v2542 = vmax.f32 %v2480, 0.0
      %v2543 = vmax.f32 %v2483, 0.0
      %v2544 = vmax.f32 %v2488, 0.0
      %v2545 = vmax.f32 %v2491, 0.0
      %v2546 = vmax.f32 %v2496, 0.0
      %v2547 = vmax.f32 %v2499, 0.0
      %v2548 = vmax.f32 %v2504, 0.0
      %v2549 = vmax.f32 %v2507, 0.0
      %v2550 = vmax.f32 %v2512, 0.0
      %v2551 = vmax.f32 %v2515, 0.0
      %v2552 = vmax.f32 %v2520, 0.0
      %v2553 = vmax.f32 %v2523, 0.0
      %v2554 = vmax.f32 %v2528, 0.0
      %v2555 = vmax.f32 %v2531, 0.0
      %v2556 = vmax.f32 %v2536, 0.0
      %v2557 = vmax.f32 %v2539, 0.0
      %v2558 = vpack.c.bf16 %v2543, %v2542
      %v2559 = vpack.c.bf16 %v2545, %v2544
      %v2560 = vpack.c.bf16 %v2547, %v2546
      %v2561 = vpack.c.bf16 %v2549, %v2548
      %v2562 = vpack.c.bf16 %v2551, %v2550
      %v2563 = vpack.c.bf16 %v2553, %v2552
      %v2564 = vpack.c.bf16 %v2555, %v2554
      %v2565 = vpack.c.bf16 %v2557, %v2556
      %v2574 = vunpack.c.l.b16 %v2558
      %v2575 = vunpack.c.h.b16 %v2558
      %v2576 = vunpack.c.l.b16 %v2559
      %v2577 = vunpack.c.h.b16 %v2559
      %v2578 = vunpack.c.l.b16 %v2560
      %v2579 = vunpack.c.h.b16 %v2560
      %v2580 = vunpack.c.l.b16 %v2561
      %v2581 = vunpack.c.h.b16 %v2561
      %v2582 = vunpack.c.l.b16 %v2562
      %v2583 = vunpack.c.h.b16 %v2562
      %v2584 = vunpack.c.l.b16 %v2563
      %v2585 = vunpack.c.h.b16 %v2563
      %v2586 = vunpack.c.l.b16 %v2564
      %v2587 = vunpack.c.h.b16 %v2564
      %v2588 = vunpack.c.l.b16 %v2565
      %v2589 = vunpack.c.h.b16 %v2565
      %v2590 = vpack.c.b16 %v2574, %v2574
      %v2591 = vpack.c.b16 %v2575, %v2575
      %v2592 = vpack.c.b16 %v2576, %v2576
      %v2593 = vpack.c.b16 %v2577, %v2577
      %v2594 = vpack.c.b16 %v2578, %v2578
      %v2595 = vpack.c.b16 %v2579, %v2579
      %v2596 = vpack.c.b16 %v2580, %v2580
      %v2597 = vpack.c.b16 %v2581, %v2581
      %v2598 = vpack.c.b16 %v2582, %v2582
      %v2599 = vpack.c.b16 %v2583, %v2583
      %v2600 = vpack.c.b16 %v2584, %v2584
      %v2601 = vpack.c.b16 %v2585, %v2585
      %v2602 = vpack.c.b16 %v2586, %v2586
      %v2603 = vpack.c.b16 %v2587, %v2587
      %v2604 = vpack.c.b16 %v2588, %v2588
      %v2605 = vpack.c.b16 %v2589, %v2589
      %2622 = vst [vmem:[%s499] sm:$0xf] %v2590
      %2623 = vst [vmem:[%s499 + $0x4] sm:$0xf] %v2591
      %2624 = vst [vmem:[%s499 + $0x8] sm:$0xf] %v2592
      %2625 = vst [vmem:[%s499 + $0xc] sm:$0xf] %v2593
      %2626 = vst [vmem:[%s499 + $0x10] sm:$0xf] %v2594
      %2627 = vst [vmem:[%s499 + $0x14] sm:$0xf] %v2595
      %2628 = vst [vmem:[%s499 + $0x18] sm:$0xf] %v2596
      %2629 = vst [vmem:[%s499 + $0x1c] sm:$0xf] %v2597
      %2630 = vst [vmem:[%s499 + $0x20] sm:$0xf] %v2598
      %2631 = vst [vmem:[%s499 + $0x24] sm:$0xf] %v2599
      %2632 = vst [vmem:[%s499 + $0x28] sm:$0xf] %v2600
      %2633 = vst [vmem:[%s499 + $0x2c] sm:$0xf] %v2601
      %2634 = vst [vmem:[%s499 + $0x30] sm:$0xf] %v2602
      %2635 = vst [vmem:[%s499 + $0x34] sm:$0xf] %v2603
      %2636 = vst [vmem:[%s499 + $0x38] sm:$0xf] %v2604
      %2637 = vst [vmem:[%s499 + $0x3c] sm:$0xf] %v2605
      %s2638 = smul.u32 8, %s25
      %p2639 = scmp.lt.s32.totalorder %s24, 1
      %s2640 = scalar_select %p2639, %s24, 1
      %p2641 = scmp.lt.s32.totalorder %s2638, 15
      %s2642 = scalar_select %p2641, %s2638, 15
      %s2643 = smul.addr %s2642, 2
      %s2644 = smul.addr %s2640, 32
      %s2645 = sadd.s32 %s2643, %s2644
      %s2646 = smul.addr %s2645, 4
      %s2647 = scalar_lea.vmem %s9, %s2646
      // Predicated region
      $region65: #{conv_block_forward.1} parent=55 // pred_check
        %p2648 = pneg %p278
      $region66: #{conv_block_forward.1} parent=55 // pred_check_branch
        %2650 = sbr.rel (%p2648) target = $region68
      $region67: #{conv_block_forward.1} parent=55 // pred_region
        %s2651 = smul.u32 8, %s25
      $region68: #{conv_block_forward.1} parent=55 // pred_fallthru
        _
    $region56: #{conv_block_forward.1} parent=5 // pred_fallthru
      _
    %p2652 = scmp.le.s32.totalorder 2, %s15
    // Predicated region
    $region69: #{conv_block_forward.1} parent=5 // pred_check
      %p2653 = pneg %p2652
    $region70: #{conv_block_forward.1} parent=5 // pred_check_branch
      %2655 = sbr.rel (%p2653) target = $region72
    $region71: #{conv_block_forward.1} parent=5 // pred_region
      %s2656 = ssub.s32 %s15, 2
      // Predicated region
      $region73: #{conv_block_forward.1} parent=71 // pred_check
        %p2657 = pneg %p284
      $region74: #{conv_block_forward.1} parent=71 // pred_check_branch
        %2659 = sbr.rel (%p2657) target = $region76
      $region75: #{conv_block_forward.1} parent=71 // pred_region
        %s2660 = smul.u32 8, %s27
        %p2661 = scmp.lt.s32.totalorder %s26, 1
        %s2662 = scalar_select %p2661, %s26, 1
        %p2663 = scmp.lt.s32.totalorder %s2660, 15
        %s2664 = scalar_select %p2663, %s2660, 15
        %s2665 = smul.addr %s2664, 2
        %s2666 = smul.addr %s2662, 32
        %s2667 = sadd.s32 %s2665, %s2666
        %s2668 = smul.addr %s2667, 4
        %s2669 = scalar_lea.vmem %s9, %s2668
      $region76: #{conv_block_forward.1} parent=71 // pred_fallthru
        _
    $region72: #{conv_block_forward.1} parent=5 // pred_fallthru
      _
  $region6: #{conv_block_forward.1} parent=0 // loop_footer
    %s19 = sadd.s32 1, %s15
  $region7: #{conv_block_forward.1} parent=0 // loop_footer_branch
    %14 = sbr.rel target = $region3
  $region8: #{conv_block_forward.1} parent=0 // loop_exit
    _

</llo_original>
